<compile_context>
chip_gen: v5e
topology: v5e:2x2
jax: 0.10.0
libtpu: 0.0.40
codegen_flags: <defaults>
</compile_context>

<pallas_src>
import jax
import jax.numpy as jnp
from jax.experimental import pallas as pl
from jax.experimental.pallas import tpu as pltpu


def ffn_ln_kernel(x_ref, w1t_ref, b1_ref, w2t_ref, b2_ref, gamma_ref, beta_ref, o_ref):
    # x tile: (TM, D); upcast once to f32 for residual / LayerNorm math.
    x = x_ref[...].astype(jnp.float32)
    cdt = w1t_ref.dtype  # matmul operand dtype (f32 for parity, bf16 for MXU-bound regime)

    # h = ReLU(x @ W1^T + b1)   -- MXU matmul, f32 accumulation
    h = jnp.dot(x.astype(cdt), w1t_ref[...],
                preferred_element_type=jnp.float32) + b1_ref[...]
    h = jnp.maximum(h, 0.0)

    # y = h @ W2^T + b2         -- MXU matmul, f32 accumulation
    y = jnp.dot(h.astype(cdt), w2t_ref[...],
                preferred_element_type=jnp.float32) + b2_ref[...]

    # residual + LayerNorm over last dim (eps = 1e-5, PyTorch default), all in f32.
    r = x + y
    mean = jnp.mean(r, axis=-1, keepdims=True)
    d = r - mean
    var = jnp.mean(d * d, axis=-1, keepdims=True)
    scale = jax.lax.rsqrt(var + 1e-5) * gamma_ref[...]   # fused gamma * rsqrt
    o_ref[...] = (d * scale + beta_ref[...]).astype(o_ref.dtype)


def _vmem_limit_bytes(tm, D, F, x_itemsize, out_itemsize, p_itemsize):
    """Derive vmem_limit_bytes from actual tile/weight sizes, capped below physical VMEM."""
    act = 2 * tm * D * (x_itemsize + out_itemsize)          # double-buffered x / out tiles
    params = 2 * (2 * D * F * p_itemsize + (F + 3 * D) * 4)  # worst case: double-buffered params
    scratch = 6 * tm * max(D, F) * 4                          # f32 temporaries inside the kernel
    need = act + params + scratch
    try:
        cap = pltpu.get_tpu_info().vmem_capacity_bytes        # 128 MiB v5e/v6e, 64 MiB v7x
    except Exception:
        cap = 64 * 1024 * 1024                                # conservative: v7x physical size
    return int(min(max(2 * need, 16 * 1024 * 1024), (cap * 7) // 8))


def positional_wise_feed_forward(x, w1, b1, w2, b2, gamma, beta, *,
                                 tm=512, compute_dtype=jnp.float32, out_dtype=None):
    """Fused FFN + residual + LayerNorm.

    x: (B, L, D).  w1, w2: (F, D) with F == D (required by the original forward).
    b1, b2: (F,).  gamma, beta: (D,).

    tm:             token tile (rows); rounded to a multiple of 128.  512-1024 is the
                    sweet spot on v5e/v6e/v7x for this HBM-bound kernel; the demo uses
                    128 only to exercise several grid steps plus a ragged tail block.
    compute_dtype:  matmul operand dtype.  f32 (default) matches PyTorch and is free
                    while the op is DMA-bound (small D); use bf16 when the op turns
                    MXU-bound (large D, especially v5e).
    out_dtype:      defaults to x.dtype, so passing bf16 activations halves both the
                    loaded and stored HBM bytes of this memory-bound kernel.

    The single token grid axis is marked "parallel" so v7x megacore shards it across
    both TensorCores (HBM is shared, so expect < 2x from that alone).
    """
    B, L, D = x.shape
    F = w1.shape[0]
    assert F == D, "module forward only composes when ffn_dim == model_dim"

    M = B * L
    # Multiple-of-128 row tiles: clean packed-sublane boundaries for the bf16 repack and
    # lane-dense, unmasked stores.  Clamp so a short sequence doesn't allocate a huge tile.
    tm = max(128, (int(tm) // 128) * 128)
    tm = min(tm, pl.cdiv(M, 128) * 128)

    x2d = x.reshape(M, D)                      # metadata-only; no extra HBM traffic

    # Weights pre-transposed to (in, out) and pre-cast to the matmul operand dtype.
    w1t = w1.T.astype(compute_dtype)           # (D, F)
    w2t = w2.T.astype(compute_dtype)           # (F, D)
    b1r = b1.reshape(1, F).astype(jnp.float32)
    b2r = b2.reshape(1, D).astype(jnp.float32)
    g = gamma.reshape(1, D).astype(jnp.float32)
    bt = beta.reshape(1, D).astype(jnp.float32)

    out_dtype = x.dtype if out_dtype is None else out_dtype
    vmem_limit = _vmem_limit_bytes(tm, D, F,
                                   jnp.dtype(x.dtype).itemsize,
                                   jnp.dtype(out_dtype).itemsize,
                                   jnp.dtype(compute_dtype).itemsize)

    # TODO(synk): for very large D (resident weights >~ half of VMEM, D >~ 3K on v7x),
    # switch to an F/K-tiled weight scheme (extra "arbitrary" grid axis + f32 VMEM
    # accumulator) instead of keeping both full weight matrices VMEM-resident.

    def call(single_buffer_params: bool):
        if single_buffer_params:
            # Parameters are fetched once and never revisited -> single-buffer them.
            def const(shape):
                return pl.BlockSpec(shape, lambda i: (0,) * len(shape),
                                    pipeline_mode=pl.Buffered(1))
        else:
            def const(shape):
                return pl.BlockSpec(shape, lambda i: (0,) * len(shape))

        return pl.pallas_call(
            ffn_ln_kernel,
            out_shape=jax.ShapeDtypeStruct((M, D), out_dtype),
            grid_spec=pltpu.PrefetchScalarGridSpec(
                num_scalar_prefetch=0,
                grid=(pl.cdiv(M, tm),),        # ragged tail handled by masked edge blocks
                in_specs=[
                    pl.BlockSpec((tm, D), lambda i: (i, 0)),   # x tile (pipelined over tokens)
                    const((D, F)),                             # W1^T, VMEM-resident
                    const((1, F)),                             # b1
                    const((F, D)),                             # W2^T, VMEM-resident
                    const((1, D)),                             # b2
                    const((1, D)),                             # gamma
                    const((1, D)),                             # beta
                ],
                out_specs=pl.BlockSpec((tm, D), lambda i: (i, 0)),
            ),
            compiler_params=pltpu.CompilerParams(
                dimension_semantics=("parallel",),             # token axis shards across TCs
                vmem_limit_bytes=vmem_limit,
            ),
        )(x2d, w1t, b1r, w2t, b2r, g, bt)

    try:
        out2d = call(True)
    except Exception:
        # pipeline_mode=pl.Buffered(1) not supported by this jax/libtpu combination:
        # fall back to default double-buffered, still constant-index (VMEM-resident) params.
        out2d = call(False)

    return out2d.reshape(B, L, D)


def reference(x, w1, b1, w2, b2, gamma, beta):
    # pure-JAX f32 reference of the PyTorch forward (high-precision matmuls).
    hp = jax.lax.Precision.HIGHEST
    h = jax.nn.relu(jnp.einsum("bld,fd->blf", x, w1, precision=hp) + b1)
    y = jnp.einsum("blf,gf->blg", h, w2, precision=hp) + b2
    r = x + y
    mean = jnp.mean(r, axis=-1, keepdims=True)
    var = jnp.mean((r - mean) ** 2, axis=-1, keepdims=True)
    return (r - mean) * jax.lax.rsqrt(var + 1e-5) * gamma + beta


if __name__ == "__main__":
    # Small shapes: batch=2, seq=150 (M=300 tokens -> 3 grid steps of 128 rows with a
    # ragged final block, exercising the pad-free masked-edge path), model_dim=ffn_dim=128.
    B, L, D = 2, 150, 128
    F = D  # ffn_dim must equal model_dim for the original forward to compose

    key = jax.random.PRNGKey(0)
    kx, kw1, kb1, kw2, kb2, kg, kbeta = jax.random.split(key, 7)

    x = jax.random.normal(kx, (B, L, D), dtype=jnp.float32)
    # deterministic synthetic parameters (Conv1d weights squeezed from (F, D, 1) to (F, D))
    w1 = jax.random.normal(kw1, (F, D), dtype=jnp.float32) * (1.0 / jnp.sqrt(D))
    b1 = jax.random.normal(kb1, (F,), dtype=jnp.float32) * 0.1
    w2 = jax.random.normal(kw2, (F, D), dtype=jnp.float32) * (1.0 / jnp.sqrt(D))
    b2 = jax.random.normal(kb2, (F,), dtype=jnp.float32) * 0.1
    gamma = 1.0 + 0.1 * jax.random.normal(kg, (D,), dtype=jnp.float32)
    beta = 0.1 * jax.random.normal(kbeta, (D,), dtype=jnp.float32)

    ref = reference(x, w1, b1, w2, b2, gamma, beta)

    # 1) f32 activations, f32 matmul operands (PyTorch-parity path).
    out = positional_wise_feed_forward(x, w1, b1, w2, b2, gamma, beta, tm=128)
    out = jax.block_until_ready(out)
    assert out.shape == (B, L, D)
    assert jnp.allclose(out, ref, atol=3e-2, rtol=3e-2), "f32 path mismatch vs reference"

    # 2) bf16 activations in/out + bf16 MXU operands (byte-reduction path for the
    #    mem-bound regime); checked loosely against the f32 reference.
    out_bf16 = positional_wise_feed_forward(
        x.astype(jnp.bfloat16), w1, b1, w2, b2, gamma, beta,
        tm=128, compute_dtype=jnp.bfloat16, out_dtype=jnp.bfloat16)
    out_bf16 = jax.block_until_ready(out_bf16)
    assert out_bf16.shape == (B, L, D)
    assert out_bf16.dtype == jnp.bfloat16
    assert jnp.allclose(out_bf16.astype(jnp.float32), ref, atol=1e-1, rtol=1e-1), \
        "bf16 path mismatch vs reference"

    print("KERNEL_OK")
</pallas_src>

<mosaic_0001>
module attributes {stable_mosaic.version = 11 : i64} {
  func.func @ffn_ln_kernel(%arg0: i32, %arg1: memref<128x128xf32, #tpu.memory_space<vmem>>, %arg2: memref<128x128xf32, #tpu.memory_space<vmem>>, %arg3: memref<1x128xf32, #tpu.memory_space<vmem>>, %arg4: memref<128x128xf32, #tpu.memory_space<vmem>>, %arg5: memref<1x128xf32, #tpu.memory_space<vmem>>, %arg6: memref<1x128xf32, #tpu.memory_space<vmem>>, %arg7: memref<1x128xf32, #tpu.memory_space<vmem>>, %arg8: memref<128x128xf32, #tpu.memory_space<vmem>>) attributes {dimension_semantics = [#tpu.dimension_semantics<parallel>], iteration_bounds = array<i64: 3>, scalar_prefetch = 0 : i64, scratch_operands = 0 : i64, tpu.core_type = #tpu.core_type<tc>, window_params = [{transform_indices = @transform_0, window_bounds = array<i64: 128, 128>}, {pipeline_mode = #tpu.pipeline_mode<synchronous>, transform_indices = @transform_1, window_bounds = array<i64: 128, 128>}, {pipeline_mode = #tpu.pipeline_mode<synchronous>, transform_indices = @transform_2, window_bounds = array<i64: 1, 128>}, {pipeline_mode = #tpu.pipeline_mode<synchronous>, transform_indices = @transform_3, window_bounds = array<i64: 128, 128>}, {pipeline_mode = #tpu.pipeline_mode<synchronous>, transform_indices = @transform_4, window_bounds = array<i64: 1, 128>}, {pipeline_mode = #tpu.pipeline_mode<synchronous>, transform_indices = @transform_5, window_bounds = array<i64: 1, 128>}, {pipeline_mode = #tpu.pipeline_mode<synchronous>, transform_indices = @transform_6, window_bounds = array<i64: 1, 128>}, {transform_indices = @transform_7, window_bounds = array<i64: 128, 128>}]} {
    %c0 = arith.constant 0 : index
    %c0_0 = arith.constant 0 : index
    %0 = vector.load %arg1[%c0, %c0_0] : memref<128x128xf32, #tpu.memory_space<vmem>>, vector<128x128xf32>
    %c0_1 = arith.constant 0 : index
    %c0_2 = arith.constant 0 : index
    %1 = vector.load %arg2[%c0_1, %c0_2] : memref<128x128xf32, #tpu.memory_space<vmem>>, vector<128x128xf32>
    %cst = arith.constant dense<0.000000e+00> : vector<128x128xf32>
    %2 = tpu.matmul %0, %1, %cst {dimension_numbers = #tpu.dot_dimension_numbers<[1], [0], [0], [1], [0, 0, 1, 1], [], []>} : vector<128x128xf32>, vector<128x128xf32>, vector<128x128xf32> -> vector<128x128xf32>
    %c0_3 = arith.constant 0 : index
    %c0_4 = arith.constant 0 : index
    %3 = vector.load %arg3[%c0_3, %c0_4] : memref<1x128xf32, #tpu.memory_space<vmem>>, vector<1x128xf32>
    %4 = vector.broadcast %3 : vector<1x128xf32> to vector<128x128xf32>
    %5 = arith.addf %2, %4 : vector<128x128xf32>
    %cst_5 = arith.constant 0.000000e+00 : f32
    %6 = vector.broadcast %cst_5 : f32 to vector<128x128xf32>
    %7 = arith.maximumf %5, %6 : vector<128x128xf32>
    %c0_6 = arith.constant 0 : index
    %c0_7 = arith.constant 0 : index
    %8 = vector.load %arg4[%c0_6, %c0_7] : memref<128x128xf32, #tpu.memory_space<vmem>>, vector<128x128xf32>
    %cst_8 = arith.constant dense<0.000000e+00> : vector<128x128xf32>
    %9 = tpu.matmul %7, %8, %cst_8 {dimension_numbers = #tpu.dot_dimension_numbers<[1], [0], [0], [1], [0, 0, 1, 1], [], []>} : vector<128x128xf32>, vector<128x128xf32>, vector<128x128xf32> -> vector<128x128xf32>
    %c0_9 = arith.constant 0 : index
    %c0_10 = arith.constant 0 : index
    %10 = vector.load %arg5[%c0_9, %c0_10] : memref<1x128xf32, #tpu.memory_space<vmem>>, vector<1x128xf32>
    %11 = vector.broadcast %10 : vector<1x128xf32> to vector<128x128xf32>
    %12 = arith.addf %9, %11 : vector<128x128xf32>
    %13 = arith.addf %0, %12 : vector<128x128xf32>
    %cst_11 = arith.constant dense<0.000000e+00> : vector<128xf32>
    %14 = vector.multi_reduction <add>, %13, %cst_11 [1] : vector<128x128xf32> to vector<128xf32>
    %15 = vector.shape_cast %14 : vector<128xf32> to vector<128x1xf32>
    %cst_12 = arith.constant 1.280000e+02 : f32
    %16 = vector.broadcast %cst_12 : f32 to vector<128x1xf32>
    %17 = arith.divf %15, %16 : vector<128x1xf32>
    %18 = vector.broadcast %17 : vector<128x1xf32> to vector<128x128xf32>
    %19 = arith.subf %13, %18 : vector<128x128xf32>
    %20 = arith.mulf %19, %19 : vector<128x128xf32>
    %cst_13 = arith.constant dense<0.000000e+00> : vector<128xf32>
    %21 = vector.multi_reduction <add>, %20, %cst_13 [1] : vector<128x128xf32> to vector<128xf32>
    %22 = vector.shape_cast %21 : vector<128xf32> to vector<128x1xf32>
    %cst_14 = arith.constant 1.280000e+02 : f32
    %23 = vector.broadcast %cst_14 : f32 to vector<128x1xf32>
    %24 = arith.divf %22, %23 : vector<128x1xf32>
    %cst_15 = arith.constant 9.99999974E-6 : f32
    %25 = vector.broadcast %cst_15 : f32 to vector<128x1xf32>
    %26 = arith.addf %24, %25 : vector<128x1xf32>
    %27 = math.rsqrt %26 : vector<128x1xf32>
    %c0_16 = arith.constant 0 : index
    %c0_17 = arith.constant 0 : index
    %28 = vector.load %arg6[%c0_16, %c0_17] : memref<1x128xf32, #tpu.memory_space<vmem>>, vector<1x128xf32>
    %29 = vector.broadcast %27 : vector<128x1xf32> to vector<128x128xf32>
    %30 = vector.broadcast %28 : vector<1x128xf32> to vector<128x128xf32>
    %31 = arith.mulf %29, %30 : vector<128x128xf32>
    %32 = arith.mulf %19, %31 : vector<128x128xf32>
    %c0_18 = arith.constant 0 : index
    %c0_19 = arith.constant 0 : index
    %33 = vector.load %arg7[%c0_18, %c0_19] : memref<1x128xf32, #tpu.memory_space<vmem>>, vector<1x128xf32>
    %34 = vector.broadcast %33 : vector<1x128xf32> to vector<128x128xf32>
    %35 = arith.addf %32, %34 : vector<128x128xf32>
    %c0_20 = arith.constant 0 : index
    %c0_21 = arith.constant 0 : index
    %36 = vector.load %arg8[%c0_20, %c0_21] : memref<128x128xf32, #tpu.memory_space<vmem>>, vector<128x128xf32>
    tpu.vector_store %arg8[%c0_20, %c0_21], %35 {strides = array<i32>} : memref<128x128xf32, #tpu.memory_space<vmem>>, vector<128x128xf32>,
    return
  }
  func.func @transform_0(%arg0: i32) -> (i32, i32) {
    %c0_i32 = arith.constant 0 : i32
    %c0_i32_0 = arith.constant 0 : i32
    return %arg0, %c0_i32 : i32, i32
  }
  func.func @transform_1(%arg0: i32) -> (i32, i32) {
    %c0_i32 = arith.constant 0 : i32
    %c0_i32_0 = arith.constant 0 : i32
    %c0_i32_1 = arith.constant 0 : i32
    return %c0_i32, %c0_i32_0 : i32, i32
  }
  func.func @transform_2(%arg0: i32) -> (i32, i32) {
    %c0_i32 = arith.constant 0 : i32
    %c0_i32_0 = arith.constant 0 : i32
    %c0_i32_1 = arith.constant 0 : i32
    return %c0_i32, %c0_i32_0 : i32, i32
  }
  func.func @transform_3(%arg0: i32) -> (i32, i32) {
    %c0_i32 = arith.constant 0 : i32
    %c0_i32_0 = arith.constant 0 : i32
    %c0_i32_1 = arith.constant 0 : i32
    return %c0_i32, %c0_i32_0 : i32, i32
  }
  func.func @transform_4(%arg0: i32) -> (i32, i32) {
    %c0_i32 = arith.constant 0 : i32
    %c0_i32_0 = arith.constant 0 : i32
    %c0_i32_1 = arith.constant 0 : i32
    return %c0_i32, %c0_i32_0 : i32, i32
  }
  func.func @transform_5(%arg0: i32) -> (i32, i32) {
    %c0_i32 = arith.constant 0 : i32
    %c0_i32_0 = arith.constant 0 : i32
    %c0_i32_1 = arith.constant 0 : i32
    return %c0_i32, %c0_i32_0 : i32, i32
  }
  func.func @transform_6(%arg0: i32) -> (i32, i32) {
    %c0_i32 = arith.constant 0 : i32
    %c0_i32_0 = arith.constant 0 : i32
    %c0_i32_1 = arith.constant 0 : i32
    return %c0_i32, %c0_i32_0 : i32, i32
  }
  func.func @transform_7(%arg0: i32) -> (i32, i32) {
    %c0_i32 = arith.constant 0 : i32
    %c0_i32_0 = arith.constant 0 : i32
    return %arg0, %c0_i32 : i32, i32
  }
}

module attributes {stable_mosaic.version = 11 : i64} {
  func.func @ffn_ln_kernel(%arg0: i32, %arg1: memref<128x128xf32, #tpu.memory_space<vmem>>, %arg2: memref<128x128xf32, #tpu.memory_space<vmem>>, %arg3: memref<1x128xf32, #tpu.memory_space<vmem>>, %arg4: memref<128x128xf32, #tpu.memory_space<vmem>>, %arg5: memref<1x128xf32, #tpu.memory_space<vmem>>, %arg6: memref<1x128xf32, #tpu.memory_space<vmem>>, %arg7: memref<1x128xf32, #tpu.memory_space<vmem>>, %arg8: memref<128x128xf32, #tpu.memory_space<vmem>>) attributes {dimension_semantics = [#tpu.dimension_semantics<parallel>], iteration_bounds = array<i64: 3>, scalar_prefetch = 0 : i64, scratch_operands = 0 : i64, tpu.core_type = #tpu.core_type<tc>, window_params = [{transform_indices = @transform_0, window_bounds = array<i64: 128, 128>}, {pipeline_mode = #tpu.pipeline_mode<synchronous>, transform_indices = @transform_1, window_bounds = array<i64: 128, 128>}, {pipeline_mode = #tpu.pipeline_mode<synchronous>, transform_indices = @transform_2, window_bounds = array<i64: 1, 128>}, {pipeline_mode = #tpu.pipeline_mode<synchronous>, transform_indices = @transform_3, window_bounds = array<i64: 128, 128>}, {pipeline_mode = #tpu.pipeline_mode<synchronous>, transform_indices = @transform_4, window_bounds = array<i64: 1, 128>}, {pipeline_mode = #tpu.pipeline_mode<synchronous>, transform_indices = @transform_5, window_bounds = array<i64: 1, 128>}, {pipeline_mode = #tpu.pipeline_mode<synchronous>, transform_indices = @transform_6, window_bounds = array<i64: 1, 128>}, {transform_indices = @transform_7, window_bounds = array<i64: 128, 128>}]} {
    %c0 = arith.constant 0 : index
    %c0_0 = arith.constant 0 : index
    %0 = vector.load %arg1[%c0, %c0_0] : memref<128x128xf32, #tpu.memory_space<vmem>>, vector<128x128xf32>
    %c0_1 = arith.constant 0 : index
    %c0_2 = arith.constant 0 : index
    %1 = vector.load %arg2[%c0_1, %c0_2] : memref<128x128xf32, #tpu.memory_space<vmem>>, vector<128x128xf32>
    %cst = arith.constant dense<0.000000e+00> : vector<128x128xf32>
    %2 = tpu.matmul %0, %1, %cst {dimension_numbers = #tpu.dot_dimension_numbers<[1], [0], [0], [1], [0, 0, 1, 1], [], []>} : vector<128x128xf32>, vector<128x128xf32>, vector<128x128xf32> -> vector<128x128xf32>
    %c0_3 = arith.constant 0 : index
    %c0_4 = arith.constant 0 : index
    %3 = vector.load %arg3[%c0_3, %c0_4] : memref<1x128xf32, #tpu.memory_space<vmem>>, vector<1x128xf32>
    %4 = vector.broadcast %3 : vector<1x128xf32> to vector<128x128xf32>
    %5 = arith.addf %2, %4 : vector<128x128xf32>
    %cst_5 = arith.constant 0.000000e+00 : f32
    %6 = vector.broadcast %cst_5 : f32 to vector<128x128xf32>
    %7 = arith.maximumf %5, %6 : vector<128x128xf32>
    %c0_6 = arith.constant 0 : index
    %c0_7 = arith.constant 0 : index
    %8 = vector.load %arg4[%c0_6, %c0_7] : memref<128x128xf32, #tpu.memory_space<vmem>>, vector<128x128xf32>
    %cst_8 = arith.constant dense<0.000000e+00> : vector<128x128xf32>
    %9 = tpu.matmul %7, %8, %cst_8 {dimension_numbers = #tpu.dot_dimension_numbers<[1], [0], [0], [1], [0, 0, 1, 1], [], []>} : vector<128x128xf32>, vector<128x128xf32>, vector<128x128xf32> -> vector<128x128xf32>
    %c0_9 = arith.constant 0 : index
    %c0_10 = arith.constant 0 : index
    %10 = vector.load %arg5[%c0_9, %c0_10] : memref<1x128xf32, #tpu.memory_space<vmem>>, vector<1x128xf32>
    %11 = vector.broadcast %10 : vector<1x128xf32> to vector<128x128xf32>
    %12 = arith.addf %9, %11 : vector<128x128xf32>
    %13 = arith.addf %0, %12 : vector<128x128xf32>
    %cst_11 = arith.constant dense<0.000000e+00> : vector<128xf32>
    %14 = vector.multi_reduction <add>, %13, %cst_11 [1] : vector<128x128xf32> to vector<128xf32>
    %15 = vector.shape_cast %14 : vector<128xf32> to vector<128x1xf32>
    %cst_12 = arith.constant 1.280000e+02 : f32
    %16 = vector.broadcast %cst_12 : f32 to vector<128x1xf32>
    %17 = arith.divf %15, %16 : vector<128x1xf32>
    %18 = vector.broadcast %17 : vector<128x1xf32> to vector<128x128xf32>
    %19 = arith.subf %13, %18 : vector<128x128xf32>
    %20 = arith.mulf %19, %19 : vector<128x128xf32>
    %cst_13 = arith.constant dense<0.000000e+00> : vector<128xf32>
    %21 = vector.multi_reduction <add>, %20, %cst_13 [1] : vector<128x128xf32> to vector<128xf32>
    %22 = vector.shape_cast %21 : vector<128xf32> to vector<128x1xf32>
    %cst_14 = arith.constant 1.280000e+02 : f32
    %23 = vector.broadcast %cst_14 : f32 to vector<128x1xf32>
    %24 = arith.divf %22, %23 : vector<128x1xf32>
    %cst_15 = arith.constant 9.99999974E-6 : f32
    %25 = vector.broadcast %cst_15 : f32 to vector<128x1xf32>
    %26 = arith.addf %24, %25 : vector<128x1xf32>
    %27 = math.rsqrt %26 : vector<128x1xf32>
    %c0_16 = arith.constant 0 : index
    %c0_17 = arith.constant 0 : index
    %28 = vector.load %arg6[%c0_16, %c0_17] : memref<1x128xf32, #tpu.memory_space<vmem>>, vector<1x128xf32>
    %29 = vector.broadcast %27 : vector<128x1xf32> to vector<128x128xf32>
    %30 = vector.broadcast %28 : vector<1x128xf32> to vector<128x128xf32>
    %31 = arith.mulf %29, %30 : vector<128x128xf32>
    %32 = arith.mulf %19, %31 : vector<128x128xf32>
    %c0_18 = arith.constant 0 : index
    %c0_19 = arith.constant 0 : index
    %33 = vector.load %arg7[%c0_18, %c0_19] : memref<1x128xf32, #tpu.memory_space<vmem>>, vector<1x128xf32>
    %34 = vector.broadcast %33 : vector<1x128xf32> to vector<128x128xf32>
    %35 = arith.addf %32, %34 : vector<128x128xf32>
    %c0_20 = arith.constant 0 : index
    %c0_21 = arith.constant 0 : index
    %36 = vector.load %arg8[%c0_20, %c0_21] : memref<128x128xf32, #tpu.memory_space<vmem>>, vector<128x128xf32>
    tpu.vector_store %arg8[%c0_20, %c0_21], %35 {strides = array<i32>} : memref<128x128xf32, #tpu.memory_space<vmem>>, vector<128x128xf32>,
    return
  }
  func.func @transform_0(%arg0: i32) -> (i32, i32) {
    %c0_i32 = arith.constant 0 : i32
    %c0_i32_0 = arith.constant 0 : i32
    return %arg0, %c0_i32 : i32, i32
  }
  func.func @transform_1(%arg0: i32) -> (i32, i32) {
    %c0_i32 = arith.constant 0 : i32
    %c0_i32_0 = arith.constant 0 : i32
    %c0_i32_1 = arith.constant 0 : i32
    return %c0_i32, %c0_i32_0 : i32, i32
  }
  func.func @transform_2(%arg0: i32) -> (i32, i32) {
    %c0_i32 = arith.constant 0 : i32
    %c0_i32_0 = arith.constant 0 : i32
    %c0_i32_1 = arith.constant 0 : i32
    return %c0_i32, %c0_i32_0 : i32, i32
  }
  func.func @transform_3(%arg0: i32) -> (i32, i32) {
    %c0_i32 = arith.constant 0 : i32
    %c0_i32_0 = arith.constant 0 : i32
    %c0_i32_1 = arith.constant 0 : i32
    return %c0_i32, %c0_i32_0 : i32, i32
  }
  func.func @transform_4(%arg0: i32) -> (i32, i32) {
    %c0_i32 = arith.constant 0 : i32
    %c0_i32_0 = arith.constant 0 : i32
    %c0_i32_1 = arith.constant 0 : i32
    return %c0_i32, %c0_i32_0 : i32, i32
  }
  func.func @transform_5(%arg0: i32) -> (i32, i32) {
    %c0_i32 = arith.constant 0 : i32
    %c0_i32_0 = arith.constant 0 : i32
    %c0_i32_1 = arith.constant 0 : i32
    return %c0_i32, %c0_i32_0 : i32, i32
  }
  func.func @transform_6(%arg0: i32) -> (i32, i32) {
    %c0_i32 = arith.constant 0 : i32
    %c0_i32_0 = arith.constant 0 : i32
    %c0_i32_1 = arith.constant 0 : i32
    return %c0_i32, %c0_i32_0 : i32, i32
  }
  func.func @transform_7(%arg0: i32) -> (i32, i32) {
    %c0_i32 = arith.constant 0 : i32
    %c0_i32_0 = arith.constant 0 : i32
    return %arg0, %c0_i32 : i32, i32
  }
}

</mosaic_0001>

<llo_original>
// kernel: tpu_custom_call.1
$region0: #{tpu_custom_call.1}
  #allocation0 [shape = 'u32[]', space=smem, size = 0x4, offset = 0x4, fixed_abs, tag = 'smem constant byte address 0x4 - core index']
  #allocation1 [shape = 'u32[72,128]{1,0:T(1,128)}', space=vmem, size = 0x9000, scoped, tag = 'internal scratch']
  %s0 = inlined_call_operand.hbm [shape: f32[300,128], index: 0, kind: input, shape index: {}]
  %s1 = inlined_call_operand.hbm [shape: f32[128,128], index: 1, kind: input, shape index: {}]
  %s2 = inlined_call_operand.vmem [shape: f32[1,128], index: 2, kind: input, shape index: {}]
  %s3 = inlined_call_operand.hbm [shape: f32[128,128], index: 3, kind: input, shape index: {}]
  %s4 = inlined_call_operand.vmem [shape: f32[1,128], index: 4, kind: input, shape index: {}]
  %s5 = inlined_call_operand.vmem [shape: f32[1,128], index: 5, kind: input, shape index: {}]
  %s6 = inlined_call_operand.vmem [shape: f32[1,128], index: 6, kind: input, shape index: {}]
  %s7 = inlined_call_operand.hbm [shape: f32[300,128], index: 7, kind: output, shape index: {}]
  %s8 = sld [smem:[#allocation0]]
  $region73: #{tpu_custom_call.1} parent=0
    _
  %s10 = ssub.s32 1, %s8
  %s11 = scalar_select 0, %s10, %s8
  $region1: #{tpu_custom_call.1} parent=0
    #allocation2 [shape = 'u8[131072]{0}', space=vmem, size = 0x20000, scoped, tag = 'input window, operand 0']
    #allocation3 [shape = 's32[2]{0}', space=sflag, size = 0x8, scoped, tag = 'scoped memory for tpu_custom_call.1']
    #allocation4 [shape = 's32[2]{0}', space=sflag, size = 0x8, scoped, tag = 'scoped memory for tpu_custom_call.1']
    #allocation5 [shape = 'u8[65536]{0}', space=vmem, size = 0x10000, scoped, tag = 'input window, operand 1, single buffered']
    #allocation6 [shape = 's32[1]{0}', space=sflag, size = 0x4, scoped, tag = 'scoped memory for tpu_custom_call.1']
    #allocation7 [shape = 'u8[65536]{0}', space=vmem, size = 0x10000, scoped, tag = 'input window, operand 3, single buffered']
    #allocation8 [shape = 'u8[131072]{0}', space=vmem, size = 0x20000, scoped, tag = 'output window, operand 0']
    %12 = vsyncpa [#allocation3], 0
    %s13 = scalar_lea.sflag [#allocation3], 1
    %14 = vsyncpa %s13, 0
    %15 = vsyncpa [#allocation6], 0
    %16 = vsyncpa [#allocation4], 0
    %s17 = scalar_lea.sflag [#allocation4], 1
    %18 = vsyncpa %s17, 0
    loop: start=0, step=1, limit=5
    $region2: #{tpu_custom_call.1} parent=1 // loop_pre_header
      _
    $region3: #{tpu_custom_call.1} parent=1 // loop_header
      %s20 = sphi 0, %s24
      %p21 = scmp.ge.s32.totalorder %s20, 5
      %s30 = sphi 0, %s32
      %s33 = sphi 0, %s30
      %s34 = sphi 0, %s33
      %s50 = sphi 0, %s34
      %s54 = sphi 0, %s54
      %s56 = sphi 0, %s54
      %s57 = sphi 0, %s56
      %s71 = sphi 0, %s57
      %s75 = sphi 0, %s75
      %s77 = sphi 0, %s75
      %s78 = sphi 0, %s77
      %s92 = sphi 0, %s78
      %s96 = sphi 0, %s96
      %s98 = sphi 0, %s96
      %s99 = sphi 0, %s98
      %s113 = sphi 0, %s99
      %s117 = sphi 0, %s117
      %s119 = sphi 0, %s117
      %s120 = sphi 0, %s119
      %s134 = sphi 0, %s120
      %s138 = sphi 0, %s138
      %s140 = sphi 0, %s138
      %s141 = sphi 0, %s140
      %s155 = sphi 0, %s141
      %s159 = sphi 0, %s159
      %s161 = sphi 0, %s159
      %s162 = sphi 0, %s161
      %s176 = sphi 0, %s162
      %s182 = sphi 0, %s184
      %s185 = sphi 0, %s182
      %s186 = sphi 0, %s185
      %s202 = sphi 0, %s186
    $region4: #{tpu_custom_call.1} parent=1 // loop_header_branch
      %23 = sbr.rel (%p21) target = $region8
    $region5: #{tpu_custom_call.1} parent=1 // loop_body
      %s25 = ssub.s32 %s20, 1
      %s26 = ssub.s32 %s20, 2
      %s27 = sadd.s32 %s20, 1
      %s28 = ssub.s32 %s20, %s27
      %p29 = scmp.eq.s32.totalorder %s28, 0
      %s31 = sadd.s32 %s30, 1
      %s32 = scalar_select %p29, %s30, %s31
      %p35 = pneg %p29
      %p36 = scmp.eq.s32.totalorder %s20, 2
      %p37 = por %p35, %p36
      %p38 = scmp.ne.s32.totalorder %s30, %s33
      %p39 = scmp.eq.s32.totalorder %s20, 0
      %p40 = por %p38, %p39
      %p41 = scmp.ne.s32.totalorder %s30, %s33
      %p42 = scmp.eq.s32.totalorder %s25, 2
      %p43 = por %p41, %p42
      %p44 = scmp.ne.s32.totalorder %s33, %s34
      %p45 = scmp.eq.s32.totalorder %s25, 0
      %p46 = por %p44, %p45
      %p47 = scmp.ne.s32.totalorder %s33, %s34
      %p48 = scmp.eq.s32.totalorder %s26, 2
      %p49 = por %p47, %p48
      %p51 = scmp.ne.s32.totalorder %s34, %s50
      %p52 = scmp.eq.s32.totalorder %s26, 0
      %p53 = por %p51, %p52
      %s55 = sadd.s32 %s54, 1
      %p58 = scmp.eq.s32.totalorder %s20, 2
      %p59 = scmp.ne.s32.totalorder %s54, %s56
      %p60 = scmp.eq.s32.totalorder %s20, 0
      %p61 = por %p59, %p60
      %p62 = scmp.ne.s32.totalorder %s54, %s56
      %p63 = scmp.eq.s32.totalorder %s25, 2
      %p64 = por %p62, %p63
      %p65 = scmp.ne.s32.totalorder %s56, %s57
      %p66 = scmp.eq.s32.totalorder %s25, 0
      %p67 = por %p65, %p66
      %p68 = scmp.ne.s32.totalorder %s56, %s57
      %p69 = scmp.eq.s32.totalorder %s26, 2
      %p70 = por %p68, %p69
      %p72 = scmp.ne.s32.totalorder %s57, %s71
      %p73 = scmp.eq.s32.totalorder %s26, 0
      %p74 = por %p72, %p73
      %s76 = sadd.s32 %s75, 1
      %p79 = scmp.eq.s32.totalorder %s20, 2
      %p80 = scmp.ne.s32.totalorder %s75, %s77
      %p81 = scmp.eq.s32.totalorder %s20, 0
      %p82 = por %p80, %p81
      %p83 = scmp.ne.s32.totalorder %s75, %s77
      %p84 = scmp.eq.s32.totalorder %s25, 2
      %p85 = por %p83, %p84
      %p86 = scmp.ne.s32.totalorder %s77, %s78
      %p87 = scmp.eq.s32.totalorder %s25, 0
      %p88 = por %p86, %p87
      %p89 = scmp.ne.s32.totalorder %s77, %s78
      %p90 = scmp.eq.s32.totalorder %s26, 2
      %p91 = por %p89, %p90
      %p93 = scmp.ne.s32.totalorder %s78, %s92
      %p94 = scmp.eq.s32.totalorder %s26, 0
      %p95 = por %p93, %p94
      %s97 = sadd.s32 %s96, 1
      %p100 = scmp.eq.s32.totalorder %s20, 2
      %p101 = scmp.ne.s32.totalorder %s96, %s98
      %p102 = scmp.eq.s32.totalorder %s20, 0
      %p103 = por %p101, %p102
      %p104 = scmp.ne.s32.totalorder %s96, %s98
      %p105 = scmp.eq.s32.totalorder %s25, 2
      %p106 = por %p104, %p105
      %p107 = scmp.ne.s32.totalorder %s98, %s99
      %p108 = scmp.eq.s32.totalorder %s25, 0
      %p109 = por %p107, %p108
      %p110 = scmp.ne.s32.totalorder %s98, %s99
      %p111 = scmp.eq.s32.totalorder %s26, 2
      %p112 = por %p110, %p111
      %p114 = scmp.ne.s32.totalorder %s99, %s113
      %p115 = scmp.eq.s32.totalorder %s26, 0
      %p116 = por %p114, %p115
      %s118 = sadd.s32 %s117, 1
      %p121 = scmp.eq.s32.totalorder %s20, 2
      %p122 = scmp.ne.s32.totalorder %s117, %s119
      %p123 = scmp.eq.s32.totalorder %s20, 0
      %p124 = por %p122, %p123
      %p125 = scmp.ne.s32.totalorder %s117, %s119
      %p126 = scmp.eq.s32.totalorder %s25, 2
      %p127 = por %p125, %p126
      %p128 = scmp.ne.s32.totalorder %s119, %s120
      %p129 = scmp.eq.s32.totalorder %s25, 0
      %p130 = por %p128, %p129
      %p131 = scmp.ne.s32.totalorder %s119, %s120
      %p132 = scmp.eq.s32.totalorder %s26, 2
      %p133 = por %p131, %p132
      %p135 = scmp.ne.s32.totalorder %s120, %s134
      %p136 = scmp.eq.s32.totalorder %s26, 0
      %p137 = por %p135, %p136
      %s139 = sadd.s32 %s138, 1
      %p142 = scmp.eq.s32.totalorder %s20, 2
      %p143 = scmp.ne.s32.totalorder %s138, %s140
      %p144 = scmp.eq.s32.totalorder %s20, 0
      %p145 = por %p143, %p144
      %p146 = scmp.ne.s32.totalorder %s138, %s140
      %p147 = scmp.eq.s32.totalorder %s25, 2
      %p148 = por %p146, %p147
      %p149 = scmp.ne.s32.totalorder %s140, %s141
      %p150 = scmp.eq.s32.totalorder %s25, 0
      %p151 = por %p149, %p150
      %p152 = scmp.ne.s32.totalorder %s140, %s141
      %p153 = scmp.eq.s32.totalorder %s26, 2
      %p154 = por %p152, %p153
      %p156 = scmp.ne.s32.totalorder %s141, %s155
      %p157 = scmp.eq.s32.totalorder %s26, 0
      %p158 = por %p156, %p157
      %s160 = sadd.s32 %s159, 1
      %p163 = scmp.eq.s32.totalorder %s20, 2
      %p164 = scmp.ne.s32.totalorder %s159, %s161
      %p165 = scmp.eq.s32.totalorder %s20, 0
      %p166 = por %p164, %p165
      %p167 = scmp.ne.s32.totalorder %s159, %s161
      %p168 = scmp.eq.s32.totalorder %s25, 2
      %p169 = por %p167, %p168
      %p170 = scmp.ne.s32.totalorder %s161, %s162
      %p171 = scmp.eq.s32.totalorder %s25, 0
      %p172 = por %p170, %p171
      %p173 = scmp.ne.s32.totalorder %s161, %s162
      %p174 = scmp.eq.s32.totalorder %s26, 2
      %p175 = por %p173, %p174
      %p177 = scmp.ne.s32.totalorder %s162, %s176
      %p178 = scmp.eq.s32.totalorder %s26, 0
      %p179 = por %p177, %p178
      %s180 = ssub.s32 %s20, %s27
      %p181 = scmp.eq.s32.totalorder %s180, 0
      %s183 = sadd.s32 %s182, 1
      %s184 = scalar_select %p181, %s182, %s183
      %p187 = pneg %p181
      %p188 = scmp.eq.s32.totalorder %s20, 2
      %p189 = por %p187, %p188
      %p190 = scmp.ne.s32.totalorder %s182, %s185
      %p191 = scmp.eq.s32.totalorder %s20, 0
      %p192 = por %p190, %p191
      %p193 = scmp.ne.s32.totalorder %s182, %s185
      %p194 = scmp.eq.s32.totalorder %s25, 2
      %p195 = por %p193, %p194
      %p196 = scmp.ne.s32.totalorder %s185, %s186
      %p197 = scmp.eq.s32.totalorder %s25, 0
      %p198 = por %p196, %p197
      %p199 = scmp.ne.s32.totalorder %s185, %s186
      %p200 = scmp.eq.s32.totalorder %s26, 2
      %p201 = por %p199, %p200
      %p203 = scmp.ne.s32.totalorder %s186, %s202
      %p204 = scmp.eq.s32.totalorder %s26, 0
      %p205 = por %p203, %p204
      %p206 = scmp.le.s32.totalorder 1, %s20
      %p207 = scmp.lt.s32.totalorder %s20, 4
      %p208 = pnand %p206, %p207
      %p209 = pneg %p208
      // Predicated region
      $region9: #{tpu_custom_call.1} parent=5 // pred_check
        _
      $region10: #{tpu_custom_call.1} parent=5 // pred_check_branch
        %211 = sbr.rel (%p208) target = $region12
      $region11: #{tpu_custom_call.1} parent=5 // pred_region
        %s212 = ssub.s32 %s20, 1
        // Predicated region
        $region13: #{tpu_custom_call.1} parent=11 // pred_check
          %p213 = pneg %p67
        $region14: #{tpu_custom_call.1} parent=11 // pred_check_branch
          %215 = sbr.rel (%p213) target = $region16
        $region15: #{tpu_custom_call.1} parent=11 // pred_region
          %217 = vsyncadd [#allocation6], 0
          %s218 = sshll.u32 %s1, 4
          %s219 = int_to_ptr.hbm [resolvable:$true] %s218
          %s220 = sshll.u32 [#allocation5], 4
          %s221 = int_to_ptr.vmem [resolvable:$true] %s220
          %226 = dma.hbm_to_vmem [thread:$0]  %s219, 2048, %s221, [#allocation6], 128, 128, 8
        $region16: #{tpu_custom_call.1} parent=11 // pred_fallthru
          _
        // Predicated region
        $region17: #{tpu_custom_call.1} parent=11 // pred_check
          %p227 = pneg %p88
        $region18: #{tpu_custom_call.1} parent=11 // pred_check_branch
          %229 = sbr.rel (%p227) target = $region20
        $region19: #{tpu_custom_call.1} parent=11 // pred_region
          _
        $region20: #{tpu_custom_call.1} parent=11 // pred_fallthru
          _
        // Predicated region
        $region21: #{tpu_custom_call.1} parent=11 // pred_check
          %p230 = pneg %p109
        $region22: #{tpu_custom_call.1} parent=11 // pred_check_branch
          %232 = sbr.rel (%p230) target = $region24
        $region23: #{tpu_custom_call.1} parent=11 // pred_region
          %234 = vsyncadd [#allocation6], 0
          %s235 = sshll.u32 %s3, 4
          %s236 = int_to_ptr.hbm [resolvable:$true] %s235
          %s237 = sshll.u32 [#allocation7], 4
          %s238 = int_to_ptr.vmem [resolvable:$true] %s237
          %243 = dma.hbm_to_vmem [thread:$0]  %s236, 2048, %s238, [#allocation6], 128, 128, 8
        $region24: #{tpu_custom_call.1} parent=11 // pred_fallthru
          _
        // Predicated region
        $region25: #{tpu_custom_call.1} parent=11 // pred_check
          %p244 = pneg %p130
        $region26: #{tpu_custom_call.1} parent=11 // pred_check_branch
          %246 = sbr.rel (%p244) target = $region28
        $region27: #{tpu_custom_call.1} parent=11 // pred_region
          _
        $region28: #{tpu_custom_call.1} parent=11 // pred_fallthru
          _
        // Predicated region
        $region29: #{tpu_custom_call.1} parent=11 // pred_check
          %p247 = pneg %p151
        $region30: #{tpu_custom_call.1} parent=11 // pred_check_branch
          %249 = sbr.rel (%p247) target = $region32
        $region31: #{tpu_custom_call.1} parent=11 // pred_region
          _
        $region32: #{tpu_custom_call.1} parent=11 // pred_fallthru
          _
        // Predicated region
        $region33: #{tpu_custom_call.1} parent=11 // pred_check
          %p250 = pneg %p172
        $region34: #{tpu_custom_call.1} parent=11 // pred_check_branch
          %252 = sbr.rel (%p250) target = $region36
        $region35: #{tpu_custom_call.1} parent=11 // pred_region
          _
        $region36: #{tpu_custom_call.1} parent=11 // pred_fallthru
          _
      $region12: #{tpu_custom_call.1} parent=5 // pred_fallthru
        _
      %p253 = scmp.lt.s32.totalorder %s20, 3
      // Predicated region
      $region37: #{tpu_custom_call.1} parent=5 // pred_check
        %p254 = pneg %p253
      $region38: #{tpu_custom_call.1} parent=5 // pred_check_branch
        %256 = sbr.rel (%p254) target = $region40
      $region39: #{tpu_custom_call.1} parent=5 // pred_region
        // Predicated region
        $region41: #{tpu_custom_call.1} parent=39 // pred_check
          %p257 = pneg %p40
        $region42: #{tpu_custom_call.1} parent=39 // pred_check_branch
          %259 = sbr.rel (%p257) target = $region44
        $region43: #{tpu_custom_call.1} parent=39 // pred_region
          %s260 = sand.u32 %s30, 1
          %s261 = scalar_lea.sflag [#allocation3], %s260
          %s262 = sand.u32 %s30, 1
          %s263 = smul.addr %s262, 128
          %s264 = scalar_lea.vmem [#allocation2], %s263
          %s265 = smul.u32 16, %s20
          %s266 = ssub.s32 38, %s265
          %p267 = scmp.lt.s32.totalorder %s266, 16
          %s268 = scalar_select %p267, %s266, 16
          %s269 = smul.u32 8, %s268
          %s270 = ssub.s32 128, %s269
          %s271 = sshll.u32 %s270, 4
          %272 = vsyncadd %s261, %s271
          %p273 = scmp.ne.s32.totalorder 0, %s269
          %s274 = smul.addr %s265, 8
          %s275 = scalar_lea.hbm %s0, %s274
          %s276 = smul.u32 8, %s268
          %s277 = sshll.u32 %s275, 4
          %s278 = int_to_ptr.hbm [resolvable:$true] %s277
          %s279 = sshll.u32 %s264, 4
          %s280 = int_to_ptr.vmem [resolvable:$true] %s279
          %s281 = sshll.u32 %s276, 4
          %285 = dma.hbm_to_vmem [thread:$0]  (%p273), %s278, %s281, %s280, %s261, 128, 128, 8
        $region44: #{tpu_custom_call.1} parent=39 // pred_fallthru
          _
      $region40: #{tpu_custom_call.1} parent=5 // pred_fallthru
        _
      %p286 = scmp.le.s32.totalorder 1, %s20
      %p287 = scmp.lt.s32.totalorder %s20, 4
      %p288 = pnand %p286, %p287
      %p289 = pneg %p288
      // Predicated region
      $region45: #{tpu_custom_call.1} parent=5 // pred_check
        _
      $region46: #{tpu_custom_call.1} parent=5 // pred_check_branch
        %291 = sbr.rel (%p288) target = $region48
      $region47: #{tpu_custom_call.1} parent=5 // pred_region
        %s292 = ssub.s32 %s20, 1
        %s293 = sand.u32 %s33, 1
        %s294 = scalar_lea.sflag [#allocation3], %s293
        %s295 = sand.u32 %s33, 1
        %s296 = smul.addr %s295, 128
        %s297 = scalar_lea.vmem [#allocation2], %s296
        // Predicated region
        $region49: #{tpu_custom_call.1} parent=47 // pred_check
          %p298 = pneg %p46
        $region50: #{tpu_custom_call.1} parent=47 // pred_check_branch
          %300 = sbr.rel (%p298) target = $region52
        $region51: #{tpu_custom_call.1} parent=47 // pred_region
          %302 = dma.done %s294, 2048
        $region52: #{tpu_custom_call.1} parent=47 // pred_fallthru
          _
        // Predicated region
        $region53: #{tpu_custom_call.1} parent=47 // pred_check
          %p303 = pneg %p67
        $region54: #{tpu_custom_call.1} parent=47 // pred_check_branch
          %305 = sbr.rel (%p303) target = $region56
        $region55: #{tpu_custom_call.1} parent=47 // pred_region
          %307 = dma.done [#allocation6], 2048
        $region56: #{tpu_custom_call.1} parent=47 // pred_fallthru
          _
        // Predicated region
        $region57: #{tpu_custom_call.1} parent=47 // pred_check
          %p308 = pneg %p109
        $region58: #{tpu_custom_call.1} parent=47 // pred_check_branch
          %310 = sbr.rel (%p308) target = $region60
        $region59: #{tpu_custom_call.1} parent=47 // pred_region
          %312 = dma.done [#allocation6], 2048
        $region60: #{tpu_custom_call.1} parent=47 // pred_fallthru
          _
        %s313 = sand.u32 %s33, 1
        %s314 = scalar_lea.sflag [#allocation3], %s313
        %s315 = sand.u32 %s33, 1
        %s316 = smul.addr %s315, 128
        %s317 = scalar_lea.vmem [#allocation2], %s316
        %p318 = pneg %p46
        %p319 = pneg %p43
        %p320 = pneg %p67
        %p321 = pneg %p64
        %p322 = pneg %p88
        %p323 = pneg %p85
        %p324 = pneg %p109
        %p325 = pneg %p106
        %p326 = pneg %p130
        %p327 = pneg %p127
        %p328 = pneg %p151
        %p329 = pneg %p148
        %p330 = pneg %p172
        %p331 = pneg %p169
        %p332 = pneg %p198
        %p333 = pneg %p195
        %s334 = sand.u32 %s185, 1
        %s335 = scalar_lea.sflag [#allocation4], %s334
        %s336 = sand.u32 %s185, 1
        %s337 = smul.addr %s336, 128
        %s338 = scalar_lea.vmem [#allocation8], %s337
        %s339 = smul.u32 16, %s25
        %s340 = ssub.s32 38, %s339
        %p341 = scmp.lt.s32.totalorder %s340, 16
        %s342 = scalar_select %p341, %s340, 16
        %s343 = smul.u32 8, %s342
        %s344 = smul.u32 16, %s25
        %s345 = ssub.s32 38, %s344
        %p346 = scmp.lt.s32.totalorder %s345, 16
        %s347 = scalar_select %p346, %s345, 16
        %s348 = smul.u32 8, %s347
        %v349 = vld [vmem:[%s297] sm:$0xff]
        %v350 = vld [vmem:[%s297 + $0x8] sm:$0xff]
        %v351 = vld [vmem:[%s297 + $0x10] sm:$0xff]
        %v352 = vld [vmem:[%s297 + $0x18] sm:$0xff]
        %v353 = vld [vmem:[%s297 + $0x20] sm:$0xff]
        %v354 = vld [vmem:[%s297 + $0x28] sm:$0xff]
        %v355 = vld [vmem:[%s297 + $0x30] sm:$0xff]
        %v356 = vld [vmem:[%s297 + $0x38] sm:$0xff]
        %v357 = vld [vmem:[%s297 + $0x40] sm:$0xff]
        %v358 = vld [vmem:[%s297 + $0x48] sm:$0xff]
        %v359 = vld [vmem:[%s297 + $0x50] sm:$0xff]
        %v360 = vld [vmem:[%s297 + $0x58] sm:$0xff]
        %v361 = vld [vmem:[%s297 + $0x60] sm:$0xff]
        %v362 = vld [vmem:[%s297 + $0x68] sm:$0xff]
        %v363 = vld [vmem:[%s297 + $0x70] sm:$0xff]
        %v364 = vld [vmem:[%s297 + $0x78] sm:$0xff]
        %v365 = vld [vmem:[#allocation5] sm:$0xff]
        %v366 = vld [vmem:[#allocation5 + $0x8] sm:$0xff]
        %v367 = vld [vmem:[#allocation5 + $0x10] sm:$0xff]
        %v368 = vld [vmem:[#allocation5 + $0x18] sm:$0xff]
        %v369 = vld [vmem:[#allocation5 + $0x20] sm:$0xff]
        %v370 = vld [vmem:[#allocation5 + $0x28] sm:$0xff]
        %v371 = vld [vmem:[#allocation5 + $0x30] sm:$0xff]
        %v372 = vld [vmem:[#allocation5 + $0x38] sm:$0xff]
        %v373 = vld [vmem:[#allocation5 + $0x40] sm:$0xff]
        %v374 = vld [vmem:[#allocation5 + $0x48] sm:$0xff]
        %v375 = vld [vmem:[#allocation5 + $0x50] sm:$0xff]
        %v376 = vld [vmem:[#allocation5 + $0x58] sm:$0xff]
        %v377 = vld [vmem:[#allocation5 + $0x60] sm:$0xff]
        %v378 = vld [vmem:[#allocation5 + $0x68] sm:$0xff]
        %v379 = vld [vmem:[#allocation5 + $0x70] sm:$0xff]
        %v380 = vld [vmem:[#allocation5 + $0x78] sm:$0xff]
        %v381 = vld [vmem:[%s2] sm:$0x1]
        %v383 = vperm.slane %v381, 0
        %385 = vmatpush.msra.mxu0 %v380
        %386 = vmatpush.msra.mxu0 %v379
        %387 = vmatpush.msra.mxu0 %v378
        %388 = vmatpush.msra.mxu0 %v377
        %389 = vmatpush.msra.mxu0 %v376
        %390 = vmatpush.msra.mxu0 %v375
        %391 = vmatpush.msra.mxu0 %v374
        %392 = vmatpush.msra.mxu0 %v373
        %393 = vmatpush.msra.mxu0 %v372
        %394 = vmatpush.msra.mxu0 %v371
        %395 = vmatpush.msra.mxu0 %v370
        %396 = vmatpush.msra.mxu0 %v369
        %397 = vmatpush.msra.mxu0 %v368
        %398 = vmatpush.msra.mxu0 %v367
        %399 = vmatpush.msra.mxu0 %v366
        %400 = vmatpush.msra.mxu0 %v365
        %401 = vmatmul.f32.gmra.mxu0 %v349
        %v402 = vpop.f32.mrf.mxu0
        %v403 = vadd.f32 %v383, %v402
        %404 = vmatmul.f32.gmra.mxu0 %v350
        %v405 = vpop.f32.mrf.mxu0
        %v406 = vadd.f32 %v383, %v405
        %407 = vmatmul.f32.gmra.mxu0 %v351
        %v408 = vpop.f32.mrf.mxu0
        %v409 = vadd.f32 %v383, %v408
        %410 = vmatmul.f32.gmra.mxu0 %v352
        %v411 = vpop.f32.mrf.mxu0
        %v412 = vadd.f32 %v383, %v411
        %413 = vmatmul.f32.gmra.mxu0 %v353
        %v414 = vpop.f32.mrf.mxu0
        %v415 = vadd.f32 %v383, %v414
        %416 = vmatmul.f32.gmra.mxu0 %v354
        %v417 = vpop.f32.mrf.mxu0
        %v418 = vadd.f32 %v383, %v417
        %419 = vmatmul.f32.gmra.mxu0 %v355
        %v420 = vpop.f32.mrf.mxu0
        %v421 = vadd.f32 %v383, %v420
        %422 = vmatmul.f32.gmra.mxu0 %v356
        %v423 = vpop.f32.mrf.mxu0
        %v424 = vadd.f32 %v383, %v423
        %425 = vmatmul.f32.gmra.mxu0 %v357
        %v426 = vpop.f32.mrf.mxu0
        %v427 = vadd.f32 %v383, %v426
        %428 = vmatmul.f32.gmra.mxu0 %v358
        %v429 = vpop.f32.mrf.mxu0
        %v430 = vadd.f32 %v383, %v429
        %431 = vmatmul.f32.gmra.mxu0 %v359
        %v432 = vpop.f32.mrf.mxu0
        %v433 = vadd.f32 %v383, %v432
        %434 = vmatmul.f32.gmra.mxu0 %v360
        %v435 = vpop.f32.mrf.mxu0
        %v436 = vadd.f32 %v383, %v435
        %437 = vmatmul.f32.gmra.mxu0 %v361
        %v438 = vpop.f32.mrf.mxu0
        %v439 = vadd.f32 %v383, %v438
        %440 = vmatmul.f32.gmra.mxu0 %v362
        %v441 = vpop.f32.mrf.mxu0
        %v442 = vadd.f32 %v383, %v441
        %443 = vmatmul.f32.gmra.mxu0 %v363
        %v444 = vpop.f32.mrf.mxu0
        %v445 = vadd.f32 %v383, %v444
        %446 = vmatmul.f32.gmra.mxu0 %v364
        %v447 = vpop.f32.mrf.mxu0
        %v448 = vadd.f32 %v383, %v447
        %449 = vdwg.mxu0
        %v450 = vmax.f32 %v403, 0.0
        %v451 = vmax.f32 %v406, 0.0
        %v452 = vmax.f32 %v409, 0.0
        %v453 = vmax.f32 %v412, 0.0
        %v454 = vmax.f32 %v415, 0.0
        %v455 = vmax.f32 %v418, 0.0
        %v456 = vmax.f32 %v421, 0.0
        %v457 = vmax.f32 %v424, 0.0
        %v458 = vmax.f32 %v427, 0.0
        %v459 = vmax.f32 %v430, 0.0
        %v460 = vmax.f32 %v433, 0.0
        %v461 = vmax.f32 %v436, 0.0
        %v462 = vmax.f32 %v439, 0.0
        %v463 = vmax.f32 %v442, 0.0
        %v464 = vmax.f32 %v445, 0.0
        %v465 = vmax.f32 %v448, 0.0
        %v466 = vld [vmem:[#allocation7] sm:$0xff]
        %v467 = vld [vmem:[#allocation7 + $0x8] sm:$0xff]
        %v468 = vld [vmem:[#allocation7 + $0x10] sm:$0xff]
        %v469 = vld [vmem:[#allocation7 + $0x18] sm:$0xff]
        %v470 = vld [vmem:[#allocation7 + $0x20] sm:$0xff]
        %v471 = vld [vmem:[#allocation7 + $0x28] sm:$0xff]
        %v472 = vld [vmem:[#allocation7 + $0x30] sm:$0xff]
        %v473 = vld [vmem:[#allocation7 + $0x38] sm:$0xff]
        %v474 = vld [vmem:[#allocation7 + $0x40] sm:$0xff]
        %v475 = vld [vmem:[#allocation7 + $0x48] sm:$0xff]
        %v476 = vld [vmem:[#allocation7 + $0x50] sm:$0xff]
        %v477 = vld [vmem:[#allocation7 + $0x58] sm:$0xff]
        %v478 = vld [vmem:[#allocation7 + $0x60] sm:$0xff]
        %v479 = vld [vmem:[#allocation7 + $0x68] sm:$0xff]
        %v480 = vld [vmem:[#allocation7 + $0x70] sm:$0xff]
        %v481 = vld [vmem:[#allocation7 + $0x78] sm:$0xff]
        %v482 = vld [vmem:[%s4] sm:$0x1]
        %v484 = vperm.slane %v482, 0
        %486 = vmatpush.msra.mxu0 %v481
        %487 = vmatpush.msra.mxu0 %v480
        %488 = vmatpush.msra.mxu0 %v479
        %489 = vmatpush.msra.mxu0 %v478
        %490 = vmatpush.msra.mxu0 %v477
        %491 = vmatpush.msra.mxu0 %v476
        %492 = vmatpush.msra.mxu0 %v475
        %493 = vmatpush.msra.mxu0 %v474
        %494 = vmatpush.msra.mxu0 %v473
        %495 = vmatpush.msra.mxu0 %v472
        %496 = vmatpush.msra.mxu0 %v471
        %497 = vmatpush.msra.mxu0 %v470
        %498 = vmatpush.msra.mxu0 %v469
        %499 = vmatpush.msra.mxu0 %v468
        %500 = vmatpush.msra.mxu0 %v467
        %501 = vmatpush.msra.mxu0 %v466
        %502 = vmatmul.f32.gmra.mxu0 %v450
        %v503 = vpop.f32.mrf.mxu0
        %v504 = vadd.f32 %v484, %v503
        %505 = vmatmul.f32.gmra.mxu0 %v451
        %v506 = vpop.f32.mrf.mxu0
        %v507 = vadd.f32 %v484, %v506
        %508 = vmatmul.f32.gmra.mxu0 %v452
        %v509 = vpop.f32.mrf.mxu0
        %v510 = vadd.f32 %v484, %v509
        %511 = vmatmul.f32.gmra.mxu0 %v453
        %v512 = vpop.f32.mrf.mxu0
        %v513 = vadd.f32 %v484, %v512
        %514 = vmatmul.f32.gmra.mxu0 %v454
        %v515 = vpop.f32.mrf.mxu0
        %v516 = vadd.f32 %v484, %v515
        %517 = vmatmul.f32.gmra.mxu0 %v455
        %v518 = vpop.f32.mrf.mxu0
        %v519 = vadd.f32 %v484, %v518
        %520 = vmatmul.f32.gmra.mxu0 %v456
        %v521 = vpop.f32.mrf.mxu0
        %v522 = vadd.f32 %v484, %v521
        %523 = vmatmul.f32.gmra.mxu0 %v457
        %v524 = vpop.f32.mrf.mxu0
        %v525 = vadd.f32 %v484, %v524
        %526 = vmatmul.f32.gmra.mxu0 %v458
        %v527 = vpop.f32.mrf.mxu0
        %v528 = vadd.f32 %v484, %v527
        %529 = vmatmul.f32.gmra.mxu0 %v459
        %v530 = vpop.f32.mrf.mxu0
        %v531 = vadd.f32 %v484, %v530
        %532 = vmatmul.f32.gmra.mxu0 %v460
        %v533 = vpop.f32.mrf.mxu0
        %v534 = vadd.f32 %v484, %v533
        %535 = vmatmul.f32.gmra.mxu0 %v461
        %v536 = vpop.f32.mrf.mxu0
        %v537 = vadd.f32 %v484, %v536
        %538 = vmatmul.f32.gmra.mxu0 %v462
        %v539 = vpop.f32.mrf.mxu0
        %v540 = vadd.f32 %v484, %v539
        %541 = vmatmul.f32.gmra.mxu0 %v463
        %v542 = vpop.f32.mrf.mxu0
        %v543 = vadd.f32 %v484, %v542
        %544 = vmatmul.f32.gmra.mxu0 %v464
        %v545 = vpop.f32.mrf.mxu0
        %v546 = vadd.f32 %v484, %v545
        %547 = vmatmul.f32.gmra.mxu0 %v465
        %v548 = vpop.f32.mrf.mxu0
        %v549 = vadd.f32 %v484, %v548
        %550 = vdwg.mxu0
        %v551 = vadd.f32 %v349, %v504
        %v552 = vadd.f32 %v350, %v507
        %v553 = vadd.f32 %v351, %v510
        %v554 = vadd.f32 %v352, %v513
        %v555 = vadd.f32 %v353, %v516
        %v556 = vadd.f32 %v354, %v519
        %v557 = vadd.f32 %v355, %v522
        %v558 = vadd.f32 %v356, %v525
        %v559 = vadd.f32 %v357, %v528
        %v560 = vadd.f32 %v358, %v531
        %v561 = vadd.f32 %v359, %v534
        %v562 = vadd.f32 %v360, %v537
        %v563 = vadd.f32 %v361, %v540
        %v564 = vadd.f32 %v362, %v543
        %v565 = vadd.f32 %v363, %v546
        %v566 = vadd.f32 %v364, %v549
        %567 = vadd.xlane.f32.xlu0 %v551
        %v568 = vpop.xlane.xlu0 %567
        %569 = vadd.xlane.f32.xlu0 %v552
        %v570 = vpop.xlane.xlu0 %569
        %571 = vadd.xlane.f32.xlu0 %v553
        %v572 = vpop.xlane.xlu0 %571
        %573 = vadd.xlane.f32.xlu0 %v554
        %v574 = vpop.xlane.xlu0 %573
        %575 = vadd.xlane.f32.xlu0 %v555
        %v576 = vpop.xlane.xlu0 %575
        %577 = vadd.xlane.f32.xlu0 %v556
        %v578 = vpop.xlane.xlu0 %577
        %579 = vadd.xlane.f32.xlu0 %v557
        %v580 = vpop.xlane.xlu0 %579
        %581 = vadd.xlane.f32.xlu0 %v558
        %v582 = vpop.xlane.xlu0 %581
        %583 = vadd.xlane.f32.xlu0 %v559
        %v584 = vpop.xlane.xlu0 %583
        %585 = vadd.xlane.f32.xlu0 %v560
        %v586 = vpop.xlane.xlu0 %585
        %587 = vadd.xlane.f32.xlu0 %v561
        %v588 = vpop.xlane.xlu0 %587
        %589 = vadd.xlane.f32.xlu0 %v562
        %v590 = vpop.xlane.xlu0 %589
        %591 = vadd.xlane.f32.xlu0 %v563
        %v592 = vpop.xlane.xlu0 %591
        %593 = vadd.xlane.f32.xlu0 %v564
        %v594 = vpop.xlane.xlu0 %593
        %595 = vadd.xlane.f32.xlu0 %v565
        %v596 = vpop.xlane.xlu0 %595
        %597 = vadd.xlane.f32.xlu0 %v566
        %v598 = vpop.xlane.xlu0 %597
        %v599 = vrcp.pop 128.0
        %v600 = vmul.f32 128.0, %v599
        %v601 = vsub.f32 1.0, %v600
        %v602 = vmul.f32 %v599, %v601
        %v603 = vadd.f32 %v599, %v602
        %vm604 = vweird.f32 %v599
        %v605 = vsel %vm604, %v599, %v603
        %v606 = vmul.f32 %v568, %v605
        %v607 = vmul.f32 %v570, %v605
        %v608 = vmul.f32 %v572, %v605
        %v609 = vmul.f32 %v574, %v605
        %v610 = vmul.f32 %v576, %v605
        %v611 = vmul.f32 %v578, %v605
        %v612 = vmul.f32 %v580, %v605
        %v613 = vmul.f32 %v582, %v605
        %v614 = vmul.f32 %v584, %v605
        %v615 = vmul.f32 %v586, %v605
        %v616 = vmul.f32 %v588, %v605
        %v617 = vmul.f32 %v590, %v605
        %v618 = vmul.f32 %v592, %v605
        %v619 = vmul.f32 %v594, %v605
        %v620 = vmul.f32 %v596, %v605
        %v621 = vmul.f32 %v598, %v605
        %v622 = vsub.f32 %v551, %v606
        %v623 = vsub.f32 %v552, %v607
        %v624 = vsub.f32 %v553, %v608
        %v625 = vsub.f32 %v554, %v609
        %v626 = vsub.f32 %v555, %v610
        %v627 = vsub.f32 %v556, %v611
        %v628 = vsub.f32 %v557, %v612
        %v629 = vsub.f32 %v558, %v613
        %v630 = vsub.f32 %v559, %v614
        %v631 = vsub.f32 %v560, %v615
        %v632 = vsub.f32 %v561, %v616
        %v633 = vsub.f32 %v562, %v617
        %v634 = vsub.f32 %v563, %v618
        %v635 = vsub.f32 %v564, %v619
        %v636 = vsub.f32 %v565, %v620
        %v637 = vsub.f32 %v566, %v621
        %v638 = vmul.f32 %v622, %v622
        %v639 = vmul.f32 %v623, %v623
        %v640 = vmul.f32 %v624, %v624
        %v641 = vmul.f32 %v625, %v625
        %v642 = vmul.f32 %v626, %v626
        %v643 = vmul.f32 %v627, %v627
        %v644 = vmul.f32 %v628, %v628
        %v645 = vmul.f32 %v629, %v629
        %v646 = vmul.f32 %v630, %v630
        %v647 = vmul.f32 %v631, %v631
        %v648 = vmul.f32 %v632, %v632
        %v649 = vmul.f32 %v633, %v633
        %v650 = vmul.f32 %v634, %v634
        %v651 = vmul.f32 %v635, %v635
        %v652 = vmul.f32 %v636, %v636
        %v653 = vmul.f32 %v637, %v637
        %654 = vadd.xlane.f32.xlu0 %v638
        %v655 = vpop.xlane.xlu0 %654
        %656 = vadd.xlane.f32.xlu0 %v639
        %v657 = vpop.xlane.xlu0 %656
        %658 = vadd.xlane.f32.xlu0 %v640
        %v659 = vpop.xlane.xlu0 %658
        %660 = vadd.xlane.f32.xlu0 %v641
        %v661 = vpop.xlane.xlu0 %660
        %662 = vadd.xlane.f32.xlu0 %v642
        %v663 = vpop.xlane.xlu0 %662
        %664 = vadd.xlane.f32.xlu0 %v643
        %v665 = vpop.xlane.xlu0 %664
        %666 = vadd.xlane.f32.xlu0 %v644
        %v667 = vpop.xlane.xlu0 %666
        %668 = vadd.xlane.f32.xlu0 %v645
        %v669 = vpop.xlane.xlu0 %668
        %670 = vadd.xlane.f32.xlu0 %v646
        %v671 = vpop.xlane.xlu0 %670
        %672 = vadd.xlane.f32.xlu0 %v647
        %v673 = vpop.xlane.xlu0 %672
        %674 = vadd.xlane.f32.xlu0 %v648
        %v675 = vpop.xlane.xlu0 %674
        %676 = vadd.xlane.f32.xlu0 %v649
        %v677 = vpop.xlane.xlu0 %676
        %678 = vadd.xlane.f32.xlu0 %v650
        %v679 = vpop.xlane.xlu0 %678
        %680 = vadd.xlane.f32.xlu0 %v651
        %v681 = vpop.xlane.xlu0 %680
        %682 = vadd.xlane.f32.xlu0 %v652
        %v683 = vpop.xlane.xlu0 %682
        %684 = vadd.xlane.f32.xlu0 %v653
        %v685 = vpop.xlane.xlu0 %684
        %v686 = vmul.f32 %v655, %v605
        %v687 = vmul.f32 %v657, %v605
        %v688 = vmul.f32 %v659, %v605
        %v689 = vmul.f32 %v661, %v605
        %v690 = vmul.f32 %v663, %v605
        %v691 = vmul.f32 %v665, %v605
        %v692 = vmul.f32 %v667, %v605
        %v693 = vmul.f32 %v669, %v605
        %v694 = vmul.f32 %v671, %v605
        %v695 = vmul.f32 %v673, %v605
        %v696 = vmul.f32 %v675, %v605
        %v697 = vmul.f32 %v677, %v605
        %v698 = vmul.f32 %v679, %v605
        %v699 = vmul.f32 %v681, %v605
        %v700 = vmul.f32 %v683, %v605
        %v701 = vmul.f32 %v685, %v605
        %v702 = vadd.f32 %v686, 1e-05
        %v703 = vadd.f32 %v687, 1e-05
        %v704 = vadd.f32 %v688, 1e-05
        %v705 = vadd.f32 %v689, 1e-05
        %v706 = vadd.f32 %v690, 1e-05
        %v707 = vadd.f32 %v691, 1e-05
        %v708 = vadd.f32 %v692, 1e-05
        %v709 = vadd.f32 %v693, 1e-05
        %v710 = vadd.f32 %v694, 1e-05
        %v711 = vadd.f32 %v695, 1e-05
        %v712 = vadd.f32 %v696, 1e-05
        %v713 = vadd.f32 %v697, 1e-05
        %v714 = vadd.f32 %v698, 1e-05
        %v715 = vadd.f32 %v699, 1e-05
        %v716 = vadd.f32 %v700, 1e-05
        %v717 = vadd.f32 %v701, 1e-05
        %v718 = vrsqrt.pop %v702
        %v719 = vmul.f32 %v718, %v702
        %v720 = vmul.f32 %v719, %v718
        %v721 = vmul.f32 0.5, %v720
        %v722 = vsub.f32 1.5, %v721
        %v723 = vmul.f32 %v718, %v722
        %vm724 = vweird.f32 %v702
        %vm725 = vweird.f32 %v718
        %vm726 = vmor %vm724, %vm725
        %v727 = vsel %vm726, %v718, %v723
        %v728 = vrsqrt.pop %v703
        %v729 = vmul.f32 %v728, %v703
        %v730 = vmul.f32 %v729, %v728
        %v731 = vmul.f32 0.5, %v730
        %v732 = vsub.f32 1.5, %v731
        %v733 = vmul.f32 %v728, %v732
        %vm734 = vweird.f32 %v703
        %vm735 = vweird.f32 %v728
        %vm736 = vmor %vm734, %vm735
        %v737 = vsel %vm736, %v728, %v733
        %v738 = vrsqrt.pop %v704
        %v739 = vmul.f32 %v738, %v704
        %v740 = vmul.f32 %v739, %v738
        %v741 = vmul.f32 0.5, %v740
        %v742 = vsub.f32 1.5, %v741
        %v743 = vmul.f32 %v738, %v742
        %vm744 = vweird.f32 %v704
        %vm745 = vweird.f32 %v738
        %vm746 = vmor %vm744, %vm745
        %v747 = vsel %vm746, %v738, %v743
        %v748 = vrsqrt.pop %v705
        %v749 = vmul.f32 %v748, %v705
        %v750 = vmul.f32 %v749, %v748
        %v751 = vmul.f32 0.5, %v750
        %v752 = vsub.f32 1.5, %v751
        %v753 = vmul.f32 %v748, %v752
        %vm754 = vweird.f32 %v705
        %vm755 = vweird.f32 %v748
        %vm756 = vmor %vm754, %vm755
        %v757 = vsel %vm756, %v748, %v753
        %v758 = vrsqrt.pop %v706
        %v759 = vmul.f32 %v758, %v706
        %v760 = vmul.f32 %v759, %v758
        %v761 = vmul.f32 0.5, %v760
        %v762 = vsub.f32 1.5, %v761
        %v763 = vmul.f32 %v758, %v762
        %vm764 = vweird.f32 %v706
        %vm765 = vweird.f32 %v758
        %vm766 = vmor %vm764, %vm765
        %v767 = vsel %vm766, %v758, %v763
        %v768 = vrsqrt.pop %v707
        %v769 = vmul.f32 %v768, %v707
        %v770 = vmul.f32 %v769, %v768
        %v771 = vmul.f32 0.5, %v770
        %v772 = vsub.f32 1.5, %v771
        %v773 = vmul.f32 %v768, %v772
        %vm774 = vweird.f32 %v707
        %vm775 = vweird.f32 %v768
        %vm776 = vmor %vm774, %vm775
        %v777 = vsel %vm776, %v768, %v773
        %v778 = vrsqrt.pop %v708
        %v779 = vmul.f32 %v778, %v708
        %v780 = vmul.f32 %v779, %v778
        %v781 = vmul.f32 0.5, %v780
        %v782 = vsub.f32 1.5, %v781
        %v783 = vmul.f32 %v778, %v782
        %vm784 = vweird.f32 %v708
        %vm785 = vweird.f32 %v778
        %vm786 = vmor %vm784, %vm785
        %v787 = vsel %vm786, %v778, %v783
        %v788 = vrsqrt.pop %v709
        %v789 = vmul.f32 %v788, %v709
        %v790 = vmul.f32 %v789, %v788
        %v791 = vmul.f32 0.5, %v790
        %v792 = vsub.f32 1.5, %v791
        %v793 = vmul.f32 %v788, %v792
        %vm794 = vweird.f32 %v709
        %vm795 = vweird.f32 %v788
        %vm796 = vmor %vm794, %vm795
        %v797 = vsel %vm796, %v788, %v793
        %v798 = vrsqrt.pop %v710
        %v799 = vmul.f32 %v798, %v710
        %v800 = vmul.f32 %v799, %v798
        %v801 = vmul.f32 0.5, %v800
        %v802 = vsub.f32 1.5, %v801
        %v803 = vmul.f32 %v798, %v802
        %vm804 = vweird.f32 %v710
        %vm805 = vweird.f32 %v798
        %vm806 = vmor %vm804, %vm805
        %v807 = vsel %vm806, %v798, %v803
        %v808 = vrsqrt.pop %v711
        %v809 = vmul.f32 %v808, %v711
        %v810 = vmul.f32 %v809, %v808
        %v811 = vmul.f32 0.5, %v810
        %v812 = vsub.f32 1.5, %v811
        %v813 = vmul.f32 %v808, %v812
        %vm814 = vweird.f32 %v711
        %vm815 = vweird.f32 %v808
        %vm816 = vmor %vm814, %vm815
        %v817 = vsel %vm816, %v808, %v813
        %v818 = vrsqrt.pop %v712
        %v819 = vmul.f32 %v818, %v712
        %v820 = vmul.f32 %v819, %v818
        %v821 = vmul.f32 0.5, %v820
        %v822 = vsub.f32 1.5, %v821
        %v823 = vmul.f32 %v818, %v822
        %vm824 = vweird.f32 %v712
        %vm825 = vweird.f32 %v818
        %vm826 = vmor %vm824, %vm825
        %v827 = vsel %vm826, %v818, %v823
        %v828 = vrsqrt.pop %v713
        %v829 = vmul.f32 %v828, %v713
        %v830 = vmul.f32 %v829, %v828
        %v831 = vmul.f32 0.5, %v830
        %v832 = vsub.f32 1.5, %v831
        %v833 = vmul.f32 %v828, %v832
        %vm834 = vweird.f32 %v713
        %vm835 = vweird.f32 %v828
        %vm836 = vmor %vm834, %vm835
        %v837 = vsel %vm836, %v828, %v833
        %v838 = vrsqrt.pop %v714
        %v839 = vmul.f32 %v838, %v714
        %v840 = vmul.f32 %v839, %v838
        %v841 = vmul.f32 0.5, %v840
        %v842 = vsub.f32 1.5, %v841
        %v843 = vmul.f32 %v838, %v842
        %vm844 = vweird.f32 %v714
        %vm845 = vweird.f32 %v838
        %vm846 = vmor %vm844, %vm845
        %v847 = vsel %vm846, %v838, %v843
        %v848 = vrsqrt.pop %v715
        %v849 = vmul.f32 %v848, %v715
        %v850 = vmul.f32 %v849, %v848
        %v851 = vmul.f32 0.5, %v850
        %v852 = vsub.f32 1.5, %v851
        %v853 = vmul.f32 %v848, %v852
        %vm854 = vweird.f32 %v715
        %vm855 = vweird.f32 %v848
        %vm856 = vmor %vm854, %vm855
        %v857 = vsel %vm856, %v848, %v853
        %v858 = vrsqrt.pop %v716
        %v859 = vmul.f32 %v858, %v716
        %v860 = vmul.f32 %v859, %v858
        %v861 = vmul.f32 0.5, %v860
        %v862 = vsub.f32 1.5, %v861
        %v863 = vmul.f32 %v858, %v862
        %vm864 = vweird.f32 %v716
        %vm865 = vweird.f32 %v858
        %vm866 = vmor %vm864, %vm865
        %v867 = vsel %vm866, %v858, %v863
        %v868 = vrsqrt.pop %v717
        %v869 = vmul.f32 %v868, %v717
        %v870 = vmul.f32 %v869, %v868
        %v871 = vmul.f32 0.5, %v870
        %v872 = vsub.f32 1.5, %v871
        %v873 = vmul.f32 %v868, %v872
        %vm874 = vweird.f32 %v717
        %vm875 = vweird.f32 %v868
        %vm876 = vmor %vm874, %vm875
        %v877 = vsel %vm876, %v868, %v873
        %v878 = vld [vmem:[%s5] sm:$0x1]
        %v880 = vperm.slane %v878, 0
        %v882 = vmul.f32 %v727, %v880
        %v883 = vmul.f32 %v737, %v880
        %v884 = vmul.f32 %v747, %v880
        %v885 = vmul.f32 %v757, %v880
        %v886 = vmul.f32 %v767, %v880
        %v887 = vmul.f32 %v777, %v880
        %v888 = vmul.f32 %v787, %v880
        %v889 = vmul.f32 %v797, %v880
        %v890 = vmul.f32 %v807, %v880
        %v891 = vmul.f32 %v817, %v880
        %v892 = vmul.f32 %v827, %v880
        %v893 = vmul.f32 %v837, %v880
        %v894 = vmul.f32 %v847, %v880
        %v895 = vmul.f32 %v857, %v880
        %v896 = vmul.f32 %v867, %v880
        %v897 = vmul.f32 %v877, %v880
        %v898 = vmul.f32 %v622, %v882
        %v899 = vmul.f32 %v623, %v883
        %v900 = vmul.f32 %v624, %v884
        %v901 = vmul.f32 %v625, %v885
        %v902 = vmul.f32 %v626, %v886
        %v903 = vmul.f32 %v627, %v887
        %v904 = vmul.f32 %v628, %v888
        %v905 = vmul.f32 %v629, %v889
        %v906 = vmul.f32 %v630, %v890
        %v907 = vmul.f32 %v631, %v891
        %v908 = vmul.f32 %v632, %v892
        %v909 = vmul.f32 %v633, %v893
        %v910 = vmul.f32 %v634, %v894
        %v911 = vmul.f32 %v635, %v895
        %v912 = vmul.f32 %v636, %v896
        %v913 = vmul.f32 %v637, %v897
        %v914 = vld [vmem:[%s6] sm:$0x1]
        %v916 = vperm.slane %v914, 0
        %v918 = vadd.f32 %v898, %v916
        %v919 = vadd.f32 %v899, %v916
        %v920 = vadd.f32 %v900, %v916
        %v921 = vadd.f32 %v901, %v916
        %v922 = vadd.f32 %v902, %v916
        %v923 = vadd.f32 %v903, %v916
        %v924 = vadd.f32 %v904, %v916
        %v925 = vadd.f32 %v905, %v916
        %v926 = vadd.f32 %v906, %v916
        %v927 = vadd.f32 %v907, %v916
        %v928 = vadd.f32 %v908, %v916
        %v929 = vadd.f32 %v909, %v916
        %v930 = vadd.f32 %v910, %v916
        %v931 = vadd.f32 %v911, %v916
        %v932 = vadd.f32 %v912, %v916
        %v933 = vadd.f32 %v913, %v916
        %934 = vst [vmem:[%s338] sm:$0xff] %v918
        %935 = vst [vmem:[%s338 + $0x8] sm:$0xff] %v919
        %936 = vst [vmem:[%s338 + $0x10] sm:$0xff] %v920
        %937 = vst [vmem:[%s338 + $0x18] sm:$0xff] %v921
        %938 = vst [vmem:[%s338 + $0x20] sm:$0xff] %v922
        %939 = vst [vmem:[%s338 + $0x28] sm:$0xff] %v923
        %940 = vst [vmem:[%s338 + $0x30] sm:$0xff] %v924
        %941 = vst [vmem:[%s338 + $0x38] sm:$0xff] %v925
        %942 = vst [vmem:[%s338 + $0x40] sm:$0xff] %v926
        %943 = vst [vmem:[%s338 + $0x48] sm:$0xff] %v927
        %944 = vst [vmem:[%s338 + $0x50] sm:$0xff] %v928
        %945 = vst [vmem:[%s338 + $0x58] sm:$0xff] %v929
        %946 = vst [vmem:[%s338 + $0x60] sm:$0xff] %v930
        %947 = vst [vmem:[%s338 + $0x68] sm:$0xff] %v931
        %948 = vst [vmem:[%s338 + $0x70] sm:$0xff] %v932
        %949 = vst [vmem:[%s338 + $0x78] sm:$0xff] %v933
        %s950 = sand.u32 %s185, 1
        %s951 = scalar_lea.sflag [#allocation4], %s950
        %s952 = sand.u32 %s185, 1
        %s953 = smul.addr %s952, 128
        %s954 = scalar_lea.vmem [#allocation8], %s953
        // Predicated region
        $region61: #{tpu_custom_call.1} parent=47 // pred_check
          %p955 = pneg %p195
        $region62: #{tpu_custom_call.1} parent=47 // pred_check_branch
          %957 = sbr.rel (%p955) target = $region64
        $region63: #{tpu_custom_call.1} parent=47 // pred_region
          %s958 = smul.u32 16, %s25
          %s959 = ssub.s32 38, %s958
          %p960 = scmp.lt.s32.totalorder %s959, 16
          %s961 = scalar_select %p960, %s959, 16
          %s962 = smul.u32 8, %s961
          %s963 = ssub.s32 128, %s962
          %s964 = sshll.u32 %s963, 4
          %965 = vsyncadd %s951, %s964
          %p966 = scmp.ne.s32.totalorder 0, %s962
          %s967 = smul.addr %s958, 8
          %s968 = scalar_lea.hbm %s7, %s967
          %s969 = smul.u32 8, %s961
          %s970 = sshll.u32 %s954, 4
          %s971 = int_to_ptr.vmem [resolvable:$true] %s970
          %s972 = sshll.u32 %s968, 4
          %s973 = int_to_ptr.hbm [resolvable:$true] %s972
          %s974 = sshll.u32 %s969, 4
          %978 = dma.vmem_to_hbm [thread:$0]  (%p966), %s971, %s974, %s973, %s951, 128, 128, 8
        $region64: #{tpu_custom_call.1} parent=47 // pred_fallthru
          _
      $region48: #{tpu_custom_call.1} parent=5 // pred_fallthru
        _
      %p979 = scmp.le.s32.totalorder 2, %s20
      // Predicated region
      $region65: #{tpu_custom_call.1} parent=5 // pred_check
        %p980 = pneg %p979
      $region66: #{tpu_custom_call.1} parent=5 // pred_check_branch
        %982 = sbr.rel (%p980) target = $region68
      $region67: #{tpu_custom_call.1} parent=5 // pred_region
        %s983 = ssub.s32 %s20, 2
        // Predicated region
        $region69: #{tpu_custom_call.1} parent=67 // pred_check
          %p984 = pneg %p201
        $region70: #{tpu_custom_call.1} parent=67 // pred_check_branch
          %986 = sbr.rel (%p984) target = $region72
        $region71: #{tpu_custom_call.1} parent=67 // pred_region
          %s987 = sand.u32 %s186, 1
          %s988 = scalar_lea.sflag [#allocation4], %s987
          %s989 = sand.u32 %s186, 1
          %s990 = smul.addr %s989, 128
          %s991 = scalar_lea.vmem [#allocation8], %s990
          %993 = dma.done %s988, 2048
        $region72: #{tpu_custom_call.1} parent=67 // pred_fallthru
          _
      $region68: #{tpu_custom_call.1} parent=5 // pred_fallthru
        _
    $region6: #{tpu_custom_call.1} parent=1 // loop_footer
      %s24 = sadd.s32 1, %s20
    $region7: #{tpu_custom_call.1} parent=1 // loop_footer_branch
      %19 = sbr.rel target = $region3
    $region8: #{tpu_custom_call.1} parent=1 // loop_exit
      _
    %994 = vsyncpa [#allocation3], 1
    %s995 = scalar_lea.sflag [#allocation3], 1
    %996 = vsyncpa %s995, 1
    %997 = vsyncpa [#allocation6], 1
    %998 = vsyncpa [#allocation4], 1
    %s999 = scalar_lea.sflag [#allocation4], 1
    %1000 = vsyncpa %s999, 1

// kernel: tpu_custom_call.1
$region0: #{tpu_custom_call.1}
  #allocation0 [shape = 'u32[]', space=smem, size = 0x4, offset = 0x4, fixed_abs, tag = 'smem constant byte address 0x4 - core index']
  #allocation1 [shape = 'u32[72,128]{1,0:T(1,128)}', space=vmem, size = 0x9000, scoped, tag = 'internal scratch']
  %s0 = inlined_call_operand.hbm [shape: f32[300,128], index: 0, kind: input, shape index: {}]
  %s1 = inlined_call_operand.hbm [shape: f32[128,128], index: 1, kind: input, shape index: {}]
  %s2 = inlined_call_operand.vmem [shape: f32[1,128], index: 2, kind: input, shape index: {}]
  %s3 = inlined_call_operand.hbm [shape: f32[128,128], index: 3, kind: input, shape index: {}]
  %s4 = inlined_call_operand.vmem [shape: f32[1,128], index: 4, kind: input, shape index: {}]
  %s5 = inlined_call_operand.vmem [shape: f32[1,128], index: 5, kind: input, shape index: {}]
  %s6 = inlined_call_operand.vmem [shape: f32[1,128], index: 6, kind: input, shape index: {}]
  %s7 = inlined_call_operand.hbm [shape: f32[300,128], index: 7, kind: output, shape index: {}]
  %s8 = sld [smem:[#allocation0]]
  $region73: #{tpu_custom_call.1} parent=0
    _
  %s10 = ssub.s32 1, %s8
  %s11 = scalar_select 0, %s10, %s8
  $region1: #{tpu_custom_call.1} parent=0
    #allocation2 [shape = 'u8[131072]{0}', space=vmem, size = 0x20000, scoped, tag = 'input window, operand 0']
    #allocation3 [shape = 's32[2]{0}', space=sflag, size = 0x8, scoped, tag = 'scoped memory for tpu_custom_call.1']
    #allocation4 [shape = 's32[2]{0}', space=sflag, size = 0x8, scoped, tag = 'scoped memory for tpu_custom_call.1']
    #allocation5 [shape = 'u8[65536]{0}', space=vmem, size = 0x10000, scoped, tag = 'input window, operand 1, single buffered']
    #allocation6 [shape = 's32[1]{0}', space=sflag, size = 0x4, scoped, tag = 'scoped memory for tpu_custom_call.1']
    #allocation7 [shape = 'u8[65536]{0}', space=vmem, size = 0x10000, scoped, tag = 'input window, operand 3, single buffered']
    #allocation8 [shape = 'u8[131072]{0}', space=vmem, size = 0x20000, scoped, tag = 'output window, operand 0']
    %12 = vsyncpa [#allocation3], 0
    %s13 = scalar_lea.sflag [#allocation3], 1
    %14 = vsyncpa %s13, 0
    %15 = vsyncpa [#allocation6], 0
    %16 = vsyncpa [#allocation4], 0
    %s17 = scalar_lea.sflag [#allocation4], 1
    %18 = vsyncpa %s17, 0
    loop: start=0, step=1, limit=5
    $region2: #{tpu_custom_call.1} parent=1 // loop_pre_header
      _
    $region3: #{tpu_custom_call.1} parent=1 // loop_header
      %s20 = sphi 0, %s24
      %p21 = scmp.ge.s32.totalorder %s20, 5
      %s30 = sphi 0, %s32
      %s33 = sphi 0, %s30
      %s34 = sphi 0, %s33
      %s50 = sphi 0, %s34
      %s54 = sphi 0, %s54
      %s56 = sphi 0, %s54
      %s57 = sphi 0, %s56
      %s71 = sphi 0, %s57
      %s75 = sphi 0, %s75
      %s77 = sphi 0, %s75
      %s78 = sphi 0, %s77
      %s92 = sphi 0, %s78
      %s96 = sphi 0, %s96
      %s98 = sphi 0, %s96
      %s99 = sphi 0, %s98
      %s113 = sphi 0, %s99
      %s117 = sphi 0, %s117
      %s119 = sphi 0, %s117
      %s120 = sphi 0, %s119
      %s134 = sphi 0, %s120
      %s138 = sphi 0, %s138
      %s140 = sphi 0, %s138
      %s141 = sphi 0, %s140
      %s155 = sphi 0, %s141
      %s159 = sphi 0, %s159
      %s161 = sphi 0, %s159
      %s162 = sphi 0, %s161
      %s176 = sphi 0, %s162
      %s182 = sphi 0, %s184
      %s185 = sphi 0, %s182
      %s186 = sphi 0, %s185
      %s202 = sphi 0, %s186
    $region4: #{tpu_custom_call.1} parent=1 // loop_header_branch
      %23 = sbr.rel (%p21) target = $region8
    $region5: #{tpu_custom_call.1} parent=1 // loop_body
      %s25 = ssub.s32 %s20, 1
      %s26 = ssub.s32 %s20, 2
      %s27 = sadd.s32 %s20, 1
      %s28 = ssub.s32 %s20, %s27
      %p29 = scmp.eq.s32.totalorder %s28, 0
      %s31 = sadd.s32 %s30, 1
      %s32 = scalar_select %p29, %s30, %s31
      %p35 = pneg %p29
      %p36 = scmp.eq.s32.totalorder %s20, 2
      %p37 = por %p35, %p36
      %p38 = scmp.ne.s32.totalorder %s30, %s33
      %p39 = scmp.eq.s32.totalorder %s20, 0
      %p40 = por %p38, %p39
      %p41 = scmp.ne.s32.totalorder %s30, %s33
      %p42 = scmp.eq.s32.totalorder %s25, 2
      %p43 = por %p41, %p42
      %p44 = scmp.ne.s32.totalorder %s33, %s34
      %p45 = scmp.eq.s32.totalorder %s25, 0
      %p46 = por %p44, %p45
      %p47 = scmp.ne.s32.totalorder %s33, %s34
      %p48 = scmp.eq.s32.totalorder %s26, 2
      %p49 = por %p47, %p48
      %p51 = scmp.ne.s32.totalorder %s34, %s50
      %p52 = scmp.eq.s32.totalorder %s26, 0
      %p53 = por %p51, %p52
      %s55 = sadd.s32 %s54, 1
      %p58 = scmp.eq.s32.totalorder %s20, 2
      %p59 = scmp.ne.s32.totalorder %s54, %s56
      %p60 = scmp.eq.s32.totalorder %s20, 0
      %p61 = por %p59, %p60
      %p62 = scmp.ne.s32.totalorder %s54, %s56
      %p63 = scmp.eq.s32.totalorder %s25, 2
      %p64 = por %p62, %p63
      %p65 = scmp.ne.s32.totalorder %s56, %s57
      %p66 = scmp.eq.s32.totalorder %s25, 0
      %p67 = por %p65, %p66
      %p68 = scmp.ne.s32.totalorder %s56, %s57
      %p69 = scmp.eq.s32.totalorder %s26, 2
      %p70 = por %p68, %p69
      %p72 = scmp.ne.s32.totalorder %s57, %s71
      %p73 = scmp.eq.s32.totalorder %s26, 0
      %p74 = por %p72, %p73
      %s76 = sadd.s32 %s75, 1
      %p79 = scmp.eq.s32.totalorder %s20, 2
      %p80 = scmp.ne.s32.totalorder %s75, %s77
      %p81 = scmp.eq.s32.totalorder %s20, 0
      %p82 = por %p80, %p81
      %p83 = scmp.ne.s32.totalorder %s75, %s77
      %p84 = scmp.eq.s32.totalorder %s25, 2
      %p85 = por %p83, %p84
      %p86 = scmp.ne.s32.totalorder %s77, %s78
      %p87 = scmp.eq.s32.totalorder %s25, 0
      %p88 = por %p86, %p87
      %p89 = scmp.ne.s32.totalorder %s77, %s78
      %p90 = scmp.eq.s32.totalorder %s26, 2
      %p91 = por %p89, %p90
      %p93 = scmp.ne.s32.totalorder %s78, %s92
      %p94 = scmp.eq.s32.totalorder %s26, 0
      %p95 = por %p93, %p94
      %s97 = sadd.s32 %s96, 1
      %p100 = scmp.eq.s32.totalorder %s20, 2
      %p101 = scmp.ne.s32.totalorder %s96, %s98
      %p102 = scmp.eq.s32.totalorder %s20, 0
      %p103 = por %p101, %p102
      %p104 = scmp.ne.s32.totalorder %s96, %s98
      %p105 = scmp.eq.s32.totalorder %s25, 2
      %p106 = por %p104, %p105
      %p107 = scmp.ne.s32.totalorder %s98, %s99
      %p108 = scmp.eq.s32.totalorder %s25, 0
      %p109 = por %p107, %p108
      %p110 = scmp.ne.s32.totalorder %s98, %s99
      %p111 = scmp.eq.s32.totalorder %s26, 2
      %p112 = por %p110, %p111
      %p114 = scmp.ne.s32.totalorder %s99, %s113
      %p115 = scmp.eq.s32.totalorder %s26, 0
      %p116 = por %p114, %p115
      %s118 = sadd.s32 %s117, 1
      %p121 = scmp.eq.s32.totalorder %s20, 2
      %p122 = scmp.ne.s32.totalorder %s117, %s119
      %p123 = scmp.eq.s32.totalorder %s20, 0
      %p124 = por %p122, %p123
      %p125 = scmp.ne.s32.totalorder %s117, %s119
      %p126 = scmp.eq.s32.totalorder %s25, 2
      %p127 = por %p125, %p126
      %p128 = scmp.ne.s32.totalorder %s119, %s120
      %p129 = scmp.eq.s32.totalorder %s25, 0
      %p130 = por %p128, %p129
      %p131 = scmp.ne.s32.totalorder %s119, %s120
      %p132 = scmp.eq.s32.totalorder %s26, 2
      %p133 = por %p131, %p132
      %p135 = scmp.ne.s32.totalorder %s120, %s134
      %p136 = scmp.eq.s32.totalorder %s26, 0
      %p137 = por %p135, %p136
      %s139 = sadd.s32 %s138, 1
      %p142 = scmp.eq.s32.totalorder %s20, 2
      %p143 = scmp.ne.s32.totalorder %s138, %s140
      %p144 = scmp.eq.s32.totalorder %s20, 0
      %p145 = por %p143, %p144
      %p146 = scmp.ne.s32.totalorder %s138, %s140
      %p147 = scmp.eq.s32.totalorder %s25, 2
      %p148 = por %p146, %p147
      %p149 = scmp.ne.s32.totalorder %s140, %s141
      %p150 = scmp.eq.s32.totalorder %s25, 0
      %p151 = por %p149, %p150
      %p152 = scmp.ne.s32.totalorder %s140, %s141
      %p153 = scmp.eq.s32.totalorder %s26, 2
      %p154 = por %p152, %p153
      %p156 = scmp.ne.s32.totalorder %s141, %s155
      %p157 = scmp.eq.s32.totalorder %s26, 0
      %p158 = por %p156, %p157
      %s160 = sadd.s32 %s159, 1
      %p163 = scmp.eq.s32.totalorder %s20, 2
      %p164 = scmp.ne.s32.totalorder %s159, %s161
      %p165 = scmp.eq.s32.totalorder %s20, 0
      %p166 = por %p164, %p165
      %p167 = scmp.ne.s32.totalorder %s159, %s161
      %p168 = scmp.eq.s32.totalorder %s25, 2
      %p169 = por %p167, %p168
      %p170 = scmp.ne.s32.totalorder %s161, %s162
      %p171 = scmp.eq.s32.totalorder %s25, 0
      %p172 = por %p170, %p171
      %p173 = scmp.ne.s32.totalorder %s161, %s162
      %p174 = scmp.eq.s32.totalorder %s26, 2
      %p175 = por %p173, %p174
      %p177 = scmp.ne.s32.totalorder %s162, %s176
      %p178 = scmp.eq.s32.totalorder %s26, 0
      %p179 = por %p177, %p178
      %s180 = ssub.s32 %s20, %s27
      %p181 = scmp.eq.s32.totalorder %s180, 0
      %s183 = sadd.s32 %s182, 1
      %s184 = scalar_select %p181, %s182, %s183
      %p187 = pneg %p181
      %p188 = scmp.eq.s32.totalorder %s20, 2
      %p189 = por %p187, %p188
      %p190 = scmp.ne.s32.totalorder %s182, %s185
      %p191 = scmp.eq.s32.totalorder %s20, 0
      %p192 = por %p190, %p191
      %p193 = scmp.ne.s32.totalorder %s182, %s185
      %p194 = scmp.eq.s32.totalorder %s25, 2
      %p195 = por %p193, %p194
      %p196 = scmp.ne.s32.totalorder %s185, %s186
      %p197 = scmp.eq.s32.totalorder %s25, 0
      %p198 = por %p196, %p197
      %p199 = scmp.ne.s32.totalorder %s185, %s186
      %p200 = scmp.eq.s32.totalorder %s26, 2
      %p201 = por %p199, %p200
      %p203 = scmp.ne.s32.totalorder %s186, %s202
      %p204 = scmp.eq.s32.totalorder %s26, 0
      %p205 = por %p203, %p204
      %p206 = scmp.le.s32.totalorder 1, %s20
      %p207 = scmp.lt.s32.totalorder %s20, 4
      %p208 = pnand %p206, %p207
      %p209 = pneg %p208
      // Predicated region
      $region9: #{tpu_custom_call.1} parent=5 // pred_check
        _
      $region10: #{tpu_custom_call.1} parent=5 // pred_check_branch
        %211 = sbr.rel (%p208) target = $region12
      $region11: #{tpu_custom_call.1} parent=5 // pred_region
        %s212 = ssub.s32 %s20, 1
        // Predicated region
        $region13: #{tpu_custom_call.1} parent=11 // pred_check
          %p213 = pneg %p67
        $region14: #{tpu_custom_call.1} parent=11 // pred_check_branch
          %215 = sbr.rel (%p213) target = $region16
        $region15: #{tpu_custom_call.1} parent=11 // pred_region
          %217 = vsyncadd [#allocation6], 0
          %s218 = sshll.u32 %s1, 4
          %s219 = int_to_ptr.hbm [resolvable:$true] %s218
          %s220 = sshll.u32 [#allocation5], 4
          %s221 = int_to_ptr.vmem [resolvable:$true] %s220
          %226 = dma.hbm_to_vmem [thread:$0]  %s219, 2048, %s221, [#allocation6], 128, 128, 8
        $region16: #{tpu_custom_call.1} parent=11 // pred_fallthru
          _
        // Predicated region
        $region17: #{tpu_custom_call.1} parent=11 // pred_check
          %p227 = pneg %p88
        $region18: #{tpu_custom_call.1} parent=11 // pred_check_branch
          %229 = sbr.rel (%p227) target = $region20
        $region19: #{tpu_custom_call.1} parent=11 // pred_region
          _
        $region20: #{tpu_custom_call.1} parent=11 // pred_fallthru
          _
        // Predicated region
        $region21: #{tpu_custom_call.1} parent=11 // pred_check
          %p230 = pneg %p109
        $region22: #{tpu_custom_call.1} parent=11 // pred_check_branch
          %232 = sbr.rel (%p230) target = $region24
        $region23: #{tpu_custom_call.1} parent=11 // pred_region
          %234 = vsyncadd [#allocation6], 0
          %s235 = sshll.u32 %s3, 4
          %s236 = int_to_ptr.hbm [resolvable:$true] %s235
          %s237 = sshll.u32 [#allocation7], 4
          %s238 = int_to_ptr.vmem [resolvable:$true] %s237
          %243 = dma.hbm_to_vmem [thread:$0]  %s236, 2048, %s238, [#allocation6], 128, 128, 8
        $region24: #{tpu_custom_call.1} parent=11 // pred_fallthru
          _
        // Predicated region
        $region25: #{tpu_custom_call.1} parent=11 // pred_check
          %p244 = pneg %p130
        $region26: #{tpu_custom_call.1} parent=11 // pred_check_branch
          %246 = sbr.rel (%p244) target = $region28
        $region27: #{tpu_custom_call.1} parent=11 // pred_region
          _
        $region28: #{tpu_custom_call.1} parent=11 // pred_fallthru
          _
        // Predicated region
        $region29: #{tpu_custom_call.1} parent=11 // pred_check
          %p247 = pneg %p151
        $region30: #{tpu_custom_call.1} parent=11 // pred_check_branch
          %249 = sbr.rel (%p247) target = $region32
        $region31: #{tpu_custom_call.1} parent=11 // pred_region
          _
        $region32: #{tpu_custom_call.1} parent=11 // pred_fallthru
          _
        // Predicated region
        $region33: #{tpu_custom_call.1} parent=11 // pred_check
          %p250 = pneg %p172
        $region34: #{tpu_custom_call.1} parent=11 // pred_check_branch
          %252 = sbr.rel (%p250) target = $region36
        $region35: #{tpu_custom_call.1} parent=11 // pred_region
          _
        $region36: #{tpu_custom_call.1} parent=11 // pred_fallthru
          _
      $region12: #{tpu_custom_call.1} parent=5 // pred_fallthru
        _
      %p253 = scmp.lt.s32.totalorder %s20, 3
      // Predicated region
      $region37: #{tpu_custom_call.1} parent=5 // pred_check
        %p254 = pneg %p253
      $region38: #{tpu_custom_call.1} parent=5 // pred_check_branch
        %256 = sbr.rel (%p254) target = $region40
      $region39: #{tpu_custom_call.1} parent=5 // pred_region
        // Predicated region
        $region41: #{tpu_custom_call.1} parent=39 // pred_check
          %p257 = pneg %p40
        $region42: #{tpu_custom_call.1} parent=39 // pred_check_branch
          %259 = sbr.rel (%p257) target = $region44
        $region43: #{tpu_custom_call.1} parent=39 // pred_region
          %s260 = sand.u32 %s30, 1
          %s261 = scalar_lea.sflag [#allocation3], %s260
          %s262 = sand.u32 %s30, 1
          %s263 = smul.addr %s262, 128
          %s264 = scalar_lea.vmem [#allocation2], %s263
          %s265 = smul.u32 16, %s20
          %s266 = ssub.s32 38, %s265
          %p267 = scmp.lt.s32.totalorder %s266, 16
          %s268 = scalar_select %p267, %s266, 16
          %s269 = smul.u32 8, %s268
          %s270 = ssub.s32 128, %s269
          %s271 = sshll.u32 %s270, 4
          %272 = vsyncadd %s261, %s271
          %p273 = scmp.ne.s32.totalorder 0, %s269
          %s274 = smul.addr %s265, 8
          %s275 = scalar_lea.hbm %s0, %s274
          %s276 = smul.u32 8, %s268
          %s277 = sshll.u32 %s275, 4
          %s278 = int_to_ptr.hbm [resolvable:$true] %s277
          %s279 = sshll.u32 %s264, 4
          %s280 = int_to_ptr.vmem [resolvable:$true] %s279
          %s281 = sshll.u32 %s276, 4
          %285 = dma.hbm_to_vmem [thread:$0]  (%p273), %s278, %s281, %s280, %s261, 128, 128, 8
        $region44: #{tpu_custom_call.1} parent=39 // pred_fallthru
          _
      $region40: #{tpu_custom_call.1} parent=5 // pred_fallthru
        _
      %p286 = scmp.le.s32.totalorder 1, %s20
      %p287 = scmp.lt.s32.totalorder %s20, 4
      %p288 = pnand %p286, %p287
      %p289 = pneg %p288
      // Predicated region
      $region45: #{tpu_custom_call.1} parent=5 // pred_check
        _
      $region46: #{tpu_custom_call.1} parent=5 // pred_check_branch
        %291 = sbr.rel (%p288) target = $region48
      $region47: #{tpu_custom_call.1} parent=5 // pred_region
        %s292 = ssub.s32 %s20, 1
        %s293 = sand.u32 %s33, 1
        %s294 = scalar_lea.sflag [#allocation3], %s293
        %s295 = sand.u32 %s33, 1
        %s296 = smul.addr %s295, 128
        %s297 = scalar_lea.vmem [#allocation2], %s296
        // Predicated region
        $region49: #{tpu_custom_call.1} parent=47 // pred_check
          %p298 = pneg %p46
        $region50: #{tpu_custom_call.1} parent=47 // pred_check_branch
          %300 = sbr.rel (%p298) target = $region52
        $region51: #{tpu_custom_call.1} parent=47 // pred_region
          %302 = dma.done %s294, 2048
        $region52: #{tpu_custom_call.1} parent=47 // pred_fallthru
          _
        // Predicated region
        $region53: #{tpu_custom_call.1} parent=47 // pred_check
          %p303 = pneg %p67
        $region54: #{tpu_custom_call.1} parent=47 // pred_check_branch
          %305 = sbr.rel (%p303) target = $region56
        $region55: #{tpu_custom_call.1} parent=47 // pred_region
          %307 = dma.done [#allocation6], 2048
        $region56: #{tpu_custom_call.1} parent=47 // pred_fallthru
          _
        // Predicated region
        $region57: #{tpu_custom_call.1} parent=47 // pred_check
          %p308 = pneg %p109
        $region58: #{tpu_custom_call.1} parent=47 // pred_check_branch
          %310 = sbr.rel (%p308) target = $region60
        $region59: #{tpu_custom_call.1} parent=47 // pred_region
          %312 = dma.done [#allocation6], 2048
        $region60: #{tpu_custom_call.1} parent=47 // pred_fallthru
          _
        %s313 = sand.u32 %s33, 1
        %s314 = scalar_lea.sflag [#allocation3], %s313
        %s315 = sand.u32 %s33, 1
        %s316 = smul.addr %s315, 128
        %s317 = scalar_lea.vmem [#allocation2], %s316
        %p318 = pneg %p46
        %p319 = pneg %p43
        %p320 = pneg %p67
        %p321 = pneg %p64
        %p322 = pneg %p88
        %p323 = pneg %p85
        %p324 = pneg %p109
        %p325 = pneg %p106
        %p326 = pneg %p130
        %p327 = pneg %p127
        %p328 = pneg %p151
        %p329 = pneg %p148
        %p330 = pneg %p172
        %p331 = pneg %p169
        %p332 = pneg %p198
        %p333 = pneg %p195
        %s334 = sand.u32 %s185, 1
        %s335 = scalar_lea.sflag [#allocation4], %s334
        %s336 = sand.u32 %s185, 1
        %s337 = smul.addr %s336, 128
        %s338 = scalar_lea.vmem [#allocation8], %s337
        %s339 = smul.u32 16, %s25
        %s340 = ssub.s32 38, %s339
        %p341 = scmp.lt.s32.totalorder %s340, 16
        %s342 = scalar_select %p341, %s340, 16
        %s343 = smul.u32 8, %s342
        %s344 = smul.u32 16, %s25
        %s345 = ssub.s32 38, %s344
        %p346 = scmp.lt.s32.totalorder %s345, 16
        %s347 = scalar_select %p346, %s345, 16
        %s348 = smul.u32 8, %s347
        %v349 = vld [vmem:[%s297] sm:$0xff]
        %v350 = vld [vmem:[%s297 + $0x8] sm:$0xff]
        %v351 = vld [vmem:[%s297 + $0x10] sm:$0xff]
        %v352 = vld [vmem:[%s297 + $0x18] sm:$0xff]
        %v353 = vld [vmem:[%s297 + $0x20] sm:$0xff]
        %v354 = vld [vmem:[%s297 + $0x28] sm:$0xff]
        %v355 = vld [vmem:[%s297 + $0x30] sm:$0xff]
        %v356 = vld [vmem:[%s297 + $0x38] sm:$0xff]
        %v357 = vld [vmem:[%s297 + $0x40] sm:$0xff]
        %v358 = vld [vmem:[%s297 + $0x48] sm:$0xff]
        %v359 = vld [vmem:[%s297 + $0x50] sm:$0xff]
        %v360 = vld [vmem:[%s297 + $0x58] sm:$0xff]
        %v361 = vld [vmem:[%s297 + $0x60] sm:$0xff]
        %v362 = vld [vmem:[%s297 + $0x68] sm:$0xff]
        %v363 = vld [vmem:[%s297 + $0x70] sm:$0xff]
        %v364 = vld [vmem:[%s297 + $0x78] sm:$0xff]
        %v365 = vld [vmem:[#allocation5] sm:$0xff]
        %v366 = vld [vmem:[#allocation5 + $0x8] sm:$0xff]
        %v367 = vld [vmem:[#allocation5 + $0x10] sm:$0xff]
        %v368 = vld [vmem:[#allocation5 + $0x18] sm:$0xff]
        %v369 = vld [vmem:[#allocation5 + $0x20] sm:$0xff]
        %v370 = vld [vmem:[#allocation5 + $0x28] sm:$0xff]
        %v371 = vld [vmem:[#allocation5 + $0x30] sm:$0xff]
        %v372 = vld [vmem:[#allocation5 + $0x38] sm:$0xff]
        %v373 = vld [vmem:[#allocation5 + $0x40] sm:$0xff]
        %v374 = vld [vmem:[#allocation5 + $0x48] sm:$0xff]
        %v375 = vld [vmem:[#allocation5 + $0x50] sm:$0xff]
        %v376 = vld [vmem:[#allocation5 + $0x58] sm:$0xff]
        %v377 = vld [vmem:[#allocation5 + $0x60] sm:$0xff]
        %v378 = vld [vmem:[#allocation5 + $0x68] sm:$0xff]
        %v379 = vld [vmem:[#allocation5 + $0x70] sm:$0xff]
        %v380 = vld [vmem:[#allocation5 + $0x78] sm:$0xff]
        %v381 = vld [vmem:[%s2] sm:$0x1]
        %v383 = vperm.slane %v381, 0
        %385 = vmatpush.msra.mxu0 %v380
        %386 = vmatpush.msra.mxu0 %v379
        %387 = vmatpush.msra.mxu0 %v378
        %388 = vmatpush.msra.mxu0 %v377
        %389 = vmatpush.msra.mxu0 %v376
        %390 = vmatpush.msra.mxu0 %v375
        %391 = vmatpush.msra.mxu0 %v374
        %392 = vmatpush.msra.mxu0 %v373
        %393 = vmatpush.msra.mxu0 %v372
        %394 = vmatpush.msra.mxu0 %v371
        %395 = vmatpush.msra.mxu0 %v370
        %396 = vmatpush.msra.mxu0 %v369
        %397 = vmatpush.msra.mxu0 %v368
        %398 = vmatpush.msra.mxu0 %v367
        %399 = vmatpush.msra.mxu0 %v366
        %400 = vmatpush.msra.mxu0 %v365
        %401 = vmatmul.f32.gmra.mxu0 %v349
        %v402 = vpop.f32.mrf.mxu0
        %v403 = vadd.f32 %v383, %v402
        %404 = vmatmul.f32.gmra.mxu0 %v350
        %v405 = vpop.f32.mrf.mxu0
        %v406 = vadd.f32 %v383, %v405
        %407 = vmatmul.f32.gmra.mxu0 %v351
        %v408 = vpop.f32.mrf.mxu0
        %v409 = vadd.f32 %v383, %v408
        %410 = vmatmul.f32.gmra.mxu0 %v352
        %v411 = vpop.f32.mrf.mxu0
        %v412 = vadd.f32 %v383, %v411
        %413 = vmatmul.f32.gmra.mxu0 %v353
        %v414 = vpop.f32.mrf.mxu0
        %v415 = vadd.f32 %v383, %v414
        %416 = vmatmul.f32.gmra.mxu0 %v354
        %v417 = vpop.f32.mrf.mxu0
        %v418 = vadd.f32 %v383, %v417
        %419 = vmatmul.f32.gmra.mxu0 %v355
        %v420 = vpop.f32.mrf.mxu0
        %v421 = vadd.f32 %v383, %v420
        %422 = vmatmul.f32.gmra.mxu0 %v356
        %v423 = vpop.f32.mrf.mxu0
        %v424 = vadd.f32 %v383, %v423
        %425 = vmatmul.f32.gmra.mxu0 %v357
        %v426 = vpop.f32.mrf.mxu0
        %v427 = vadd.f32 %v383, %v426
        %428 = vmatmul.f32.gmra.mxu0 %v358
        %v429 = vpop.f32.mrf.mxu0
        %v430 = vadd.f32 %v383, %v429
        %431 = vmatmul.f32.gmra.mxu0 %v359
        %v432 = vpop.f32.mrf.mxu0
        %v433 = vadd.f32 %v383, %v432
        %434 = vmatmul.f32.gmra.mxu0 %v360
        %v435 = vpop.f32.mrf.mxu0
        %v436 = vadd.f32 %v383, %v435
        %437 = vmatmul.f32.gmra.mxu0 %v361
        %v438 = vpop.f32.mrf.mxu0
        %v439 = vadd.f32 %v383, %v438
        %440 = vmatmul.f32.gmra.mxu0 %v362
        %v441 = vpop.f32.mrf.mxu0
        %v442 = vadd.f32 %v383, %v441
        %443 = vmatmul.f32.gmra.mxu0 %v363
        %v444 = vpop.f32.mrf.mxu0
        %v445 = vadd.f32 %v383, %v444
        %446 = vmatmul.f32.gmra.mxu0 %v364
        %v447 = vpop.f32.mrf.mxu0
        %v448 = vadd.f32 %v383, %v447
        %449 = vdwg.mxu0
        %v450 = vmax.f32 %v403, 0.0
        %v451 = vmax.f32 %v406, 0.0
        %v452 = vmax.f32 %v409, 0.0
        %v453 = vmax.f32 %v412, 0.0
        %v454 = vmax.f32 %v415, 0.0
        %v455 = vmax.f32 %v418, 0.0
        %v456 = vmax.f32 %v421, 0.0
        %v457 = vmax.f32 %v424, 0.0
        %v458 = vmax.f32 %v427, 0.0
        %v459 = vmax.f32 %v430, 0.0
        %v460 = vmax.f32 %v433, 0.0
        %v461 = vmax.f32 %v436, 0.0
        %v462 = vmax.f32 %v439, 0.0
        %v463 = vmax.f32 %v442, 0.0
        %v464 = vmax.f32 %v445, 0.0
        %v465 = vmax.f32 %v448, 0.0
        %v466 = vld [vmem:[#allocation7] sm:$0xff]
        %v467 = vld [vmem:[#allocation7 + $0x8] sm:$0xff]
        %v468 = vld [vmem:[#allocation7 + $0x10] sm:$0xff]
        %v469 = vld [vmem:[#allocation7 + $0x18] sm:$0xff]
        %v470 = vld [vmem:[#allocation7 + $0x20] sm:$0xff]
        %v471 = vld [vmem:[#allocation7 + $0x28] sm:$0xff]
        %v472 = vld [vmem:[#allocation7 + $0x30] sm:$0xff]
        %v473 = vld [vmem:[#allocation7 + $0x38] sm:$0xff]
        %v474 = vld [vmem:[#allocation7 + $0x40] sm:$0xff]
        %v475 = vld [vmem:[#allocation7 + $0x48] sm:$0xff]
        %v476 = vld [vmem:[#allocation7 + $0x50] sm:$0xff]
        %v477 = vld [vmem:[#allocation7 + $0x58] sm:$0xff]
        %v478 = vld [vmem:[#allocation7 + $0x60] sm:$0xff]
        %v479 = vld [vmem:[#allocation7 + $0x68] sm:$0xff]
        %v480 = vld [vmem:[#allocation7 + $0x70] sm:$0xff]
        %v481 = vld [vmem:[#allocation7 + $0x78] sm:$0xff]
        %v482 = vld [vmem:[%s4] sm:$0x1]
        %v484 = vperm.slane %v482, 0
        %486 = vmatpush.msra.mxu0 %v481
        %487 = vmatpush.msra.mxu0 %v480
        %488 = vmatpush.msra.mxu0 %v479
        %489 = vmatpush.msra.mxu0 %v478
        %490 = vmatpush.msra.mxu0 %v477
        %491 = vmatpush.msra.mxu0 %v476
        %492 = vmatpush.msra.mxu0 %v475
        %493 = vmatpush.msra.mxu0 %v474
        %494 = vmatpush.msra.mxu0 %v473
        %495 = vmatpush.msra.mxu0 %v472
        %496 = vmatpush.msra.mxu0 %v471
        %497 = vmatpush.msra.mxu0 %v470
        %498 = vmatpush.msra.mxu0 %v469
        %499 = vmatpush.msra.mxu0 %v468
        %500 = vmatpush.msra.mxu0 %v467
        %501 = vmatpush.msra.mxu0 %v466
        %502 = vmatmul.f32.gmra.mxu0 %v450
        %v503 = vpop.f32.mrf.mxu0
        %v504 = vadd.f32 %v484, %v503
        %505 = vmatmul.f32.gmra.mxu0 %v451
        %v506 = vpop.f32.mrf.mxu0
        %v507 = vadd.f32 %v484, %v506
        %508 = vmatmul.f32.gmra.mxu0 %v452
        %v509 = vpop.f32.mrf.mxu0
        %v510 = vadd.f32 %v484, %v509
        %511 = vmatmul.f32.gmra.mxu0 %v453
        %v512 = vpop.f32.mrf.mxu0
        %v513 = vadd.f32 %v484, %v512
        %514 = vmatmul.f32.gmra.mxu0 %v454
        %v515 = vpop.f32.mrf.mxu0
        %v516 = vadd.f32 %v484, %v515
        %517 = vmatmul.f32.gmra.mxu0 %v455
        %v518 = vpop.f32.mrf.mxu0
        %v519 = vadd.f32 %v484, %v518
        %520 = vmatmul.f32.gmra.mxu0 %v456
        %v521 = vpop.f32.mrf.mxu0
        %v522 = vadd.f32 %v484, %v521
        %523 = vmatmul.f32.gmra.mxu0 %v457
        %v524 = vpop.f32.mrf.mxu0
        %v525 = vadd.f32 %v484, %v524
        %526 = vmatmul.f32.gmra.mxu0 %v458
        %v527 = vpop.f32.mrf.mxu0
        %v528 = vadd.f32 %v484, %v527
        %529 = vmatmul.f32.gmra.mxu0 %v459
        %v530 = vpop.f32.mrf.mxu0
        %v531 = vadd.f32 %v484, %v530
        %532 = vmatmul.f32.gmra.mxu0 %v460
        %v533 = vpop.f32.mrf.mxu0
        %v534 = vadd.f32 %v484, %v533
        %535 = vmatmul.f32.gmra.mxu0 %v461
        %v536 = vpop.f32.mrf.mxu0
        %v537 = vadd.f32 %v484, %v536
        %538 = vmatmul.f32.gmra.mxu0 %v462
        %v539 = vpop.f32.mrf.mxu0
        %v540 = vadd.f32 %v484, %v539
        %541 = vmatmul.f32.gmra.mxu0 %v463
        %v542 = vpop.f32.mrf.mxu0
        %v543 = vadd.f32 %v484, %v542
        %544 = vmatmul.f32.gmra.mxu0 %v464
        %v545 = vpop.f32.mrf.mxu0
        %v546 = vadd.f32 %v484, %v545
        %547 = vmatmul.f32.gmra.mxu0 %v465
        %v548 = vpop.f32.mrf.mxu0
        %v549 = vadd.f32 %v484, %v548
        %550 = vdwg.mxu0
        %v551 = vadd.f32 %v349, %v504
        %v552 = vadd.f32 %v350, %v507
        %v553 = vadd.f32 %v351, %v510
        %v554 = vadd.f32 %v352, %v513
        %v555 = vadd.f32 %v353, %v516
        %v556 = vadd.f32 %v354, %v519
        %v557 = vadd.f32 %v355, %v522
        %v558 = vadd.f32 %v356, %v525
        %v559 = vadd.f32 %v357, %v528
        %v560 = vadd.f32 %v358, %v531
        %v561 = vadd.f32 %v359, %v534
        %v562 = vadd.f32 %v360, %v537
        %v563 = vadd.f32 %v361, %v540
        %v564 = vadd.f32 %v362, %v543
        %v565 = vadd.f32 %v363, %v546
        %v566 = vadd.f32 %v364, %v549
        %567 = vadd.xlane.f32.xlu0 %v551
        %v568 = vpop.xlane.xlu0 %567
        %569 = vadd.xlane.f32.xlu0 %v552
        %v570 = vpop.xlane.xlu0 %569
        %571 = vadd.xlane.f32.xlu0 %v553
        %v572 = vpop.xlane.xlu0 %571
        %573 = vadd.xlane.f32.xlu0 %v554
        %v574 = vpop.xlane.xlu0 %573
        %575 = vadd.xlane.f32.xlu0 %v555
        %v576 = vpop.xlane.xlu0 %575
        %577 = vadd.xlane.f32.xlu0 %v556
        %v578 = vpop.xlane.xlu0 %577
        %579 = vadd.xlane.f32.xlu0 %v557
        %v580 = vpop.xlane.xlu0 %579
        %581 = vadd.xlane.f32.xlu0 %v558
        %v582 = vpop.xlane.xlu0 %581
        %583 = vadd.xlane.f32.xlu0 %v559
        %v584 = vpop.xlane.xlu0 %583
        %585 = vadd.xlane.f32.xlu0 %v560
        %v586 = vpop.xlane.xlu0 %585
        %587 = vadd.xlane.f32.xlu0 %v561
        %v588 = vpop.xlane.xlu0 %587
        %589 = vadd.xlane.f32.xlu0 %v562
        %v590 = vpop.xlane.xlu0 %589
        %591 = vadd.xlane.f32.xlu0 %v563
        %v592 = vpop.xlane.xlu0 %591
        %593 = vadd.xlane.f32.xlu0 %v564
        %v594 = vpop.xlane.xlu0 %593
        %595 = vadd.xlane.f32.xlu0 %v565
        %v596 = vpop.xlane.xlu0 %595
        %597 = vadd.xlane.f32.xlu0 %v566
        %v598 = vpop.xlane.xlu0 %597
        %v599 = vrcp.pop 128.0
        %v600 = vmul.f32 128.0, %v599
        %v601 = vsub.f32 1.0, %v600
        %v602 = vmul.f32 %v599, %v601
        %v603 = vadd.f32 %v599, %v602
        %vm604 = vweird.f32 %v599
        %v605 = vsel %vm604, %v599, %v603
        %v606 = vmul.f32 %v568, %v605
        %v607 = vmul.f32 %v570, %v605
        %v608 = vmul.f32 %v572, %v605
        %v609 = vmul.f32 %v574, %v605
        %v610 = vmul.f32 %v576, %v605
        %v611 = vmul.f32 %v578, %v605
        %v612 = vmul.f32 %v580, %v605
        %v613 = vmul.f32 %v582, %v605
        %v614 = vmul.f32 %v584, %v605
        %v615 = vmul.f32 %v586, %v605
        %v616 = vmul.f32 %v588, %v605
        %v617 = vmul.f32 %v590, %v605
        %v618 = vmul.f32 %v592, %v605
        %v619 = vmul.f32 %v594, %v605
        %v620 = vmul.f32 %v596, %v605
        %v621 = vmul.f32 %v598, %v605
        %v622 = vsub.f32 %v551, %v606
        %v623 = vsub.f32 %v552, %v607
        %v624 = vsub.f32 %v553, %v608
        %v625 = vsub.f32 %v554, %v609
        %v626 = vsub.f32 %v555, %v610
        %v627 = vsub.f32 %v556, %v611
        %v628 = vsub.f32 %v557, %v612
        %v629 = vsub.f32 %v558, %v613
        %v630 = vsub.f32 %v559, %v614
        %v631 = vsub.f32 %v560, %v615
        %v632 = vsub.f32 %v561, %v616
        %v633 = vsub.f32 %v562, %v617
        %v634 = vsub.f32 %v563, %v618
        %v635 = vsub.f32 %v564, %v619
        %v636 = vsub.f32 %v565, %v620
        %v637 = vsub.f32 %v566, %v621
        %v638 = vmul.f32 %v622, %v622
        %v639 = vmul.f32 %v623, %v623
        %v640 = vmul.f32 %v624, %v624
        %v641 = vmul.f32 %v625, %v625
        %v642 = vmul.f32 %v626, %v626
        %v643 = vmul.f32 %v627, %v627
        %v644 = vmul.f32 %v628, %v628
        %v645 = vmul.f32 %v629, %v629
        %v646 = vmul.f32 %v630, %v630
        %v647 = vmul.f32 %v631, %v631
        %v648 = vmul.f32 %v632, %v632
        %v649 = vmul.f32 %v633, %v633
        %v650 = vmul.f32 %v634, %v634
        %v651 = vmul.f32 %v635, %v635
        %v652 = vmul.f32 %v636, %v636
        %v653 = vmul.f32 %v637, %v637
        %654 = vadd.xlane.f32.xlu0 %v638
        %v655 = vpop.xlane.xlu0 %654
        %656 = vadd.xlane.f32.xlu0 %v639
        %v657 = vpop.xlane.xlu0 %656
        %658 = vadd.xlane.f32.xlu0 %v640
        %v659 = vpop.xlane.xlu0 %658
        %660 = vadd.xlane.f32.xlu0 %v641
        %v661 = vpop.xlane.xlu0 %660
        %662 = vadd.xlane.f32.xlu0 %v642
        %v663 = vpop.xlane.xlu0 %662
        %664 = vadd.xlane.f32.xlu0 %v643
        %v665 = vpop.xlane.xlu0 %664
        %666 = vadd.xlane.f32.xlu0 %v644
        %v667 = vpop.xlane.xlu0 %666
        %668 = vadd.xlane.f32.xlu0 %v645
        %v669 = vpop.xlane.xlu0 %668
        %670 = vadd.xlane.f32.xlu0 %v646
        %v671 = vpop.xlane.xlu0 %670
        %672 = vadd.xlane.f32.xlu0 %v647
        %v673 = vpop.xlane.xlu0 %672
        %674 = vadd.xlane.f32.xlu0 %v648
        %v675 = vpop.xlane.xlu0 %674
        %676 = vadd.xlane.f32.xlu0 %v649
        %v677 = vpop.xlane.xlu0 %676
        %678 = vadd.xlane.f32.xlu0 %v650
        %v679 = vpop.xlane.xlu0 %678
        %680 = vadd.xlane.f32.xlu0 %v651
        %v681 = vpop.xlane.xlu0 %680
        %682 = vadd.xlane.f32.xlu0 %v652
        %v683 = vpop.xlane.xlu0 %682
        %684 = vadd.xlane.f32.xlu0 %v653
        %v685 = vpop.xlane.xlu0 %684
        %v686 = vmul.f32 %v655, %v605
        %v687 = vmul.f32 %v657, %v605
        %v688 = vmul.f32 %v659, %v605
        %v689 = vmul.f32 %v661, %v605
        %v690 = vmul.f32 %v663, %v605
        %v691 = vmul.f32 %v665, %v605
        %v692 = vmul.f32 %v667, %v605
        %v693 = vmul.f32 %v669, %v605
        %v694 = vmul.f32 %v671, %v605
        %v695 = vmul.f32 %v673, %v605
        %v696 = vmul.f32 %v675, %v605
        %v697 = vmul.f32 %v677, %v605
        %v698 = vmul.f32 %v679, %v605
        %v699 = vmul.f32 %v681, %v605
        %v700 = vmul.f32 %v683, %v605
        %v701 = vmul.f32 %v685, %v605
        %v702 = vadd.f32 %v686, 1e-05
        %v703 = vadd.f32 %v687, 1e-05
        %v704 = vadd.f32 %v688, 1e-05
        %v705 = vadd.f32 %v689, 1e-05
        %v706 = vadd.f32 %v690, 1e-05
        %v707 = vadd.f32 %v691, 1e-05
        %v708 = vadd.f32 %v692, 1e-05
        %v709 = vadd.f32 %v693, 1e-05
        %v710 = vadd.f32 %v694, 1e-05
        %v711 = vadd.f32 %v695, 1e-05
        %v712 = vadd.f32 %v696, 1e-05
        %v713 = vadd.f32 %v697, 1e-05
        %v714 = vadd.f32 %v698, 1e-05
        %v715 = vadd.f32 %v699, 1e-05
        %v716 = vadd.f32 %v700, 1e-05
        %v717 = vadd.f32 %v701, 1e-05
        %v718 = vrsqrt.pop %v702
        %v719 = vmul.f32 %v718, %v702
        %v720 = vmul.f32 %v719, %v718
        %v721 = vmul.f32 0.5, %v720
        %v722 = vsub.f32 1.5, %v721
        %v723 = vmul.f32 %v718, %v722
        %vm724 = vweird.f32 %v702
        %vm725 = vweird.f32 %v718
        %vm726 = vmor %vm724, %vm725
        %v727 = vsel %vm726, %v718, %v723
        %v728 = vrsqrt.pop %v703
        %v729 = vmul.f32 %v728, %v703
        %v730 = vmul.f32 %v729, %v728
        %v731 = vmul.f32 0.5, %v730
        %v732 = vsub.f32 1.5, %v731
        %v733 = vmul.f32 %v728, %v732
        %vm734 = vweird.f32 %v703
        %vm735 = vweird.f32 %v728
        %vm736 = vmor %vm734, %vm735
        %v737 = vsel %vm736, %v728, %v733
        %v738 = vrsqrt.pop %v704
        %v739 = vmul.f32 %v738, %v704
        %v740 = vmul.f32 %v739, %v738
        %v741 = vmul.f32 0.5, %v740
        %v742 = vsub.f32 1.5, %v741
        %v743 = vmul.f32 %v738, %v742
        %vm744 = vweird.f32 %v704
        %vm745 = vweird.f32 %v738
        %vm746 = vmor %vm744, %vm745
        %v747 = vsel %vm746, %v738, %v743
        %v748 = vrsqrt.pop %v705
        %v749 = vmul.f32 %v748, %v705
        %v750 = vmul.f32 %v749, %v748
        %v751 = vmul.f32 0.5, %v750
        %v752 = vsub.f32 1.5, %v751
        %v753 = vmul.f32 %v748, %v752
        %vm754 = vweird.f32 %v705
        %vm755 = vweird.f32 %v748
        %vm756 = vmor %vm754, %vm755
        %v757 = vsel %vm756, %v748, %v753
        %v758 = vrsqrt.pop %v706
        %v759 = vmul.f32 %v758, %v706
        %v760 = vmul.f32 %v759, %v758
        %v761 = vmul.f32 0.5, %v760
        %v762 = vsub.f32 1.5, %v761
        %v763 = vmul.f32 %v758, %v762
        %vm764 = vweird.f32 %v706
        %vm765 = vweird.f32 %v758
        %vm766 = vmor %vm764, %vm765
        %v767 = vsel %vm766, %v758, %v763
        %v768 = vrsqrt.pop %v707
        %v769 = vmul.f32 %v768, %v707
        %v770 = vmul.f32 %v769, %v768
        %v771 = vmul.f32 0.5, %v770
        %v772 = vsub.f32 1.5, %v771
        %v773 = vmul.f32 %v768, %v772
        %vm774 = vweird.f32 %v707
        %vm775 = vweird.f32 %v768
        %vm776 = vmor %vm774, %vm775
        %v777 = vsel %vm776, %v768, %v773
        %v778 = vrsqrt.pop %v708
        %v779 = vmul.f32 %v778, %v708
        %v780 = vmul.f32 %v779, %v778
        %v781 = vmul.f32 0.5, %v780
        %v782 = vsub.f32 1.5, %v781
        %v783 = vmul.f32 %v778, %v782
        %vm784 = vweird.f32 %v708
        %vm785 = vweird.f32 %v778
        %vm786 = vmor %vm784, %vm785
        %v787 = vsel %vm786, %v778, %v783
        %v788 = vrsqrt.pop %v709
        %v789 = vmul.f32 %v788, %v709
        %v790 = vmul.f32 %v789, %v788
        %v791 = vmul.f32 0.5, %v790
        %v792 = vsub.f32 1.5, %v791
        %v793 = vmul.f32 %v788, %v792
        %vm794 = vweird.f32 %v709
        %vm795 = vweird.f32 %v788
        %vm796 = vmor %vm794, %vm795
        %v797 = vsel %vm796, %v788, %v793
        %v798 = vrsqrt.pop %v710
        %v799 = vmul.f32 %v798, %v710
        %v800 = vmul.f32 %v799, %v798
        %v801 = vmul.f32 0.5, %v800
        %v802 = vsub.f32 1.5, %v801
        %v803 = vmul.f32 %v798, %v802
        %vm804 = vweird.f32 %v710
        %vm805 = vweird.f32 %v798
        %vm806 = vmor %vm804, %vm805
        %v807 = vsel %vm806, %v798, %v803
        %v808 = vrsqrt.pop %v711
        %v809 = vmul.f32 %v808, %v711
        %v810 = vmul.f32 %v809, %v808
        %v811 = vmul.f32 0.5, %v810
        %v812 = vsub.f32 1.5, %v811
        %v813 = vmul.f32 %v808, %v812
        %vm814 = vweird.f32 %v711
        %vm815 = vweird.f32 %v808
        %vm816 = vmor %vm814, %vm815
        %v817 = vsel %vm816, %v808, %v813
        %v818 = vrsqrt.pop %v712
        %v819 = vmul.f32 %v818, %v712
        %v820 = vmul.f32 %v819, %v818
        %v821 = vmul.f32 0.5, %v820
        %v822 = vsub.f32 1.5, %v821
        %v823 = vmul.f32 %v818, %v822
        %vm824 = vweird.f32 %v712
        %vm825 = vweird.f32 %v818
        %vm826 = vmor %vm824, %vm825
        %v827 = vsel %vm826, %v818, %v823
        %v828 = vrsqrt.pop %v713
        %v829 = vmul.f32 %v828, %v713
        %v830 = vmul.f32 %v829, %v828
        %v831 = vmul.f32 0.5, %v830
        %v832 = vsub.f32 1.5, %v831
        %v833 = vmul.f32 %v828, %v832
        %vm834 = vweird.f32 %v713
        %vm835 = vweird.f32 %v828
        %vm836 = vmor %vm834, %vm835
        %v837 = vsel %vm836, %v828, %v833
        %v838 = vrsqrt.pop %v714
        %v839 = vmul.f32 %v838, %v714
        %v840 = vmul.f32 %v839, %v838
        %v841 = vmul.f32 0.5, %v840
        %v842 = vsub.f32 1.5, %v841
        %v843 = vmul.f32 %v838, %v842
        %vm844 = vweird.f32 %v714
        %vm845 = vweird.f32 %v838
        %vm846 = vmor %vm844, %vm845
        %v847 = vsel %vm846, %v838, %v843
        %v848 = vrsqrt.pop %v715
        %v849 = vmul.f32 %v848, %v715
        %v850 = vmul.f32 %v849, %v848
        %v851 = vmul.f32 0.5, %v850
        %v852 = vsub.f32 1.5, %v851
        %v853 = vmul.f32 %v848, %v852
        %vm854 = vweird.f32 %v715
        %vm855 = vweird.f32 %v848
        %vm856 = vmor %vm854, %vm855
        %v857 = vsel %vm856, %v848, %v853
        %v858 = vrsqrt.pop %v716
        %v859 = vmul.f32 %v858, %v716
        %v860 = vmul.f32 %v859, %v858
        %v861 = vmul.f32 0.5, %v860
        %v862 = vsub.f32 1.5, %v861
        %v863 = vmul.f32 %v858, %v862
        %vm864 = vweird.f32 %v716
        %vm865 = vweird.f32 %v858
        %vm866 = vmor %vm864, %vm865
        %v867 = vsel %vm866, %v858, %v863
        %v868 = vrsqrt.pop %v717
        %v869 = vmul.f32 %v868, %v717
        %v870 = vmul.f32 %v869, %v868
        %v871 = vmul.f32 0.5, %v870
        %v872 = vsub.f32 1.5, %v871
        %v873 = vmul.f32 %v868, %v872
        %vm874 = vweird.f32 %v717
        %vm875 = vweird.f32 %v868
        %vm876 = vmor %vm874, %vm875
        %v877 = vsel %vm876, %v868, %v873
        %v878 = vld [vmem:[%s5] sm:$0x1]
        %v880 = vperm.slane %v878, 0
        %v882 = vmul.f32 %v727, %v880
        %v883 = vmul.f32 %v737, %v880
        %v884 = vmul.f32 %v747, %v880
        %v885 = vmul.f32 %v757, %v880
        %v886 = vmul.f32 %v767, %v880
        %v887 = vmul.f32 %v777, %v880
        %v888 = vmul.f32 %v787, %v880
        %v889 = vmul.f32 %v797, %v880
        %v890 = vmul.f32 %v807, %v880
        %v891 = vmul.f32 %v817, %v880
        %v892 = vmul.f32 %v827, %v880
        %v893 = vmul.f32 %v837, %v880
        %v894 = vmul.f32 %v847, %v880
        %v895 = vmul.f32 %v857, %v880
        %v896 = vmul.f32 %v867, %v880
        %v897 = vmul.f32 %v877, %v880
        %v898 = vmul.f32 %v622, %v882
        %v899 = vmul.f32 %v623, %v883
        %v900 = vmul.f32 %v624, %v884
        %v901 = vmul.f32 %v625, %v885
        %v902 = vmul.f32 %v626, %v886
        %v903 = vmul.f32 %v627, %v887
        %v904 = vmul.f32 %v628, %v888
        %v905 = vmul.f32 %v629, %v889
        %v906 = vmul.f32 %v630, %v890
        %v907 = vmul.f32 %v631, %v891
        %v908 = vmul.f32 %v632, %v892
        %v909 = vmul.f32 %v633, %v893
        %v910 = vmul.f32 %v634, %v894
        %v911 = vmul.f32 %v635, %v895
        %v912 = vmul.f32 %v636, %v896
        %v913 = vmul.f32 %v637, %v897
        %v914 = vld [vmem:[%s6] sm:$0x1]
        %v916 = vperm.slane %v914, 0
        %v918 = vadd.f32 %v898, %v916
        %v919 = vadd.f32 %v899, %v916
        %v920 = vadd.f32 %v900, %v916
        %v921 = vadd.f32 %v901, %v916
        %v922 = vadd.f32 %v902, %v916
        %v923 = vadd.f32 %v903, %v916
        %v924 = vadd.f32 %v904, %v916
        %v925 = vadd.f32 %v905, %v916
        %v926 = vadd.f32 %v906, %v916
        %v927 = vadd.f32 %v907, %v916
        %v928 = vadd.f32 %v908, %v916
        %v929 = vadd.f32 %v909, %v916
        %v930 = vadd.f32 %v910, %v916
        %v931 = vadd.f32 %v911, %v916
        %v932 = vadd.f32 %v912, %v916
        %v933 = vadd.f32 %v913, %v916
        %934 = vst [vmem:[%s338] sm:$0xff] %v918
        %935 = vst [vmem:[%s338 + $0x8] sm:$0xff] %v919
        %936 = vst [vmem:[%s338 + $0x10] sm:$0xff] %v920
        %937 = vst [vmem:[%s338 + $0x18] sm:$0xff] %v921
        %938 = vst [vmem:[%s338 + $0x20] sm:$0xff] %v922
        %939 = vst [vmem:[%s338 + $0x28] sm:$0xff] %v923
        %940 = vst [vmem:[%s338 + $0x30] sm:$0xff] %v924
        %941 = vst [vmem:[%s338 + $0x38] sm:$0xff] %v925
        %942 = vst [vmem:[%s338 + $0x40] sm:$0xff] %v926
        %943 = vst [vmem:[%s338 + $0x48] sm:$0xff] %v927
        %944 = vst [vmem:[%s338 + $0x50] sm:$0xff] %v928
        %945 = vst [vmem:[%s338 + $0x58] sm:$0xff] %v929
        %946 = vst [vmem:[%s338 + $0x60] sm:$0xff] %v930
        %947 = vst [vmem:[%s338 + $0x68] sm:$0xff] %v931
        %948 = vst [vmem:[%s338 + $0x70] sm:$0xff] %v932
        %949 = vst [vmem:[%s338 + $0x78] sm:$0xff] %v933
        %s950 = sand.u32 %s185, 1
        %s951 = scalar_lea.sflag [#allocation4], %s950
        %s952 = sand.u32 %s185, 1
        %s953 = smul.addr %s952, 128
        %s954 = scalar_lea.vmem [#allocation8], %s953
        // Predicated region
        $region61: #{tpu_custom_call.1} parent=47 // pred_check
          %p955 = pneg %p195
        $region62: #{tpu_custom_call.1} parent=47 // pred_check_branch
          %957 = sbr.rel (%p955) target = $region64
        $region63: #{tpu_custom_call.1} parent=47 // pred_region
          %s958 = smul.u32 16, %s25
          %s959 = ssub.s32 38, %s958
          %p960 = scmp.lt.s32.totalorder %s959, 16
          %s961 = scalar_select %p960, %s959, 16
          %s962 = smul.u32 8, %s961
          %s963 = ssub.s32 128, %s962
          %s964 = sshll.u32 %s963, 4
          %965 = vsyncadd %s951, %s964
          %p966 = scmp.ne.s32.totalorder 0, %s962
          %s967 = smul.addr %s958, 8
          %s968 = scalar_lea.hbm %s7, %s967
          %s969 = smul.u32 8, %s961
          %s970 = sshll.u32 %s954, 4
          %s971 = int_to_ptr.vmem [resolvable:$true] %s970
          %s972 = sshll.u32 %s968, 4
          %s973 = int_to_ptr.hbm [resolvable:$true] %s972
          %s974 = sshll.u32 %s969, 4
          %978 = dma.vmem_to_hbm [thread:$0]  (%p966), %s971, %s974, %s973, %s951, 128, 128, 8
        $region64: #{tpu_custom_call.1} parent=47 // pred_fallthru
          _
      $region48: #{tpu_custom_call.1} parent=5 // pred_fallthru
        _
      %p979 = scmp.le.s32.totalorder 2, %s20
      // Predicated region
      $region65: #{tpu_custom_call.1} parent=5 // pred_check
        %p980 = pneg %p979
      $region66: #{tpu_custom_call.1} parent=5 // pred_check_branch
        %982 = sbr.rel (%p980) target = $region68
      $region67: #{tpu_custom_call.1} parent=5 // pred_region
        %s983 = ssub.s32 %s20, 2
        // Predicated region
        $region69: #{tpu_custom_call.1} parent=67 // pred_check
          %p984 = pneg %p201
        $region70: #{tpu_custom_call.1} parent=67 // pred_check_branch
          %986 = sbr.rel (%p984) target = $region72
        $region71: #{tpu_custom_call.1} parent=67 // pred_region
          %s987 = sand.u32 %s186, 1
          %s988 = scalar_lea.sflag [#allocation4], %s987
          %s989 = sand.u32 %s186, 1
          %s990 = smul.addr %s989, 128
          %s991 = scalar_lea.vmem [#allocation8], %s990
          %993 = dma.done %s988, 2048
        $region72: #{tpu_custom_call.1} parent=67 // pred_fallthru
          _
      $region68: #{tpu_custom_call.1} parent=5 // pred_fallthru
        _
    $region6: #{tpu_custom_call.1} parent=1 // loop_footer
      %s24 = sadd.s32 1, %s20
    $region7: #{tpu_custom_call.1} parent=1 // loop_footer_branch
      %19 = sbr.rel target = $region3
    $region8: #{tpu_custom_call.1} parent=1 // loop_exit
      _
    %994 = vsyncpa [#allocation3], 1
    %s995 = scalar_lea.sflag [#allocation3], 1
    %996 = vsyncpa %s995, 1
    %997 = vsyncpa [#allocation6], 1
    %998 = vsyncpa [#allocation4], 1
    %s999 = scalar_lea.sflag [#allocation4], 1
    %1000 = vsyncpa %s999, 1

</llo_original>
